<compile_context>
chip_gen: v7x
topology: tpu7x:2x2x1
jax: 0.10.0
libtpu: 0.0.40
codegen_flags: <defaults>
</compile_context>

<pallas_src>
import jax
import jax.numpy as jnp
from jax.experimental import pallas as pl
from jax.experimental.pallas import tpu as pltpu


_GROUPS = 32   # samples per 128-lane row (128 lanes / 4 features)
_LANES = 128


def _mlp_kernel(x_ref, w1_ref, b1_ref, w2_ref, b2_ref, o_ref):
    """One batch tile.

    x:  (TR, 128) VMEM -- 32 samples per row, features interleaved on lanes
                          (lane 4*g+f holds feature f of sample g of that row).
    w1: (128, 128) VMEM -- block-diagonal replication of linear1's W^T
                           (keeps the interleaved layout under matmul).
    b1: (1, 128)   VMEM -- linear1 bias tiled to the interleaved layout.
    w2: (128, 32)  VMEM -- linear2 weights fused with the 4->1 per-sample
                           compaction (output lane g = sample g of the row).
    b2: (1,)       SMEM -- linear2 bias.
    o:  (TR, 32)   VMEM -- sigmoid output, lane g of row r = sample 32*r + g.
    """
    x = x_ref[...]                                           # (TR, 128)

    # Layer 1 on the MXU.  K is only 4 nonzeros per output, but the MXU is
    # otherwise idle and this removes any transpose / de-interleave of X.
    h = jnp.dot(x, w1_ref[...],
                preferred_element_type=jnp.float32,
                precision=jax.lax.Precision.HIGHEST)
    h = jnp.maximum(h + b1_ref[...], 0.0)                    # bias + ReLU (VPU)

    # Layer 2 + compaction in a single MXU pass: (TR,128) @ (128,32).
    y = jnp.dot(h, w2_ref[...],
                preferred_element_type=jnp.float32,
                precision=jax.lax.Precision.HIGHEST)
    y = y + b2_ref[0]

    # Epilogue touches 1 value per sample (1/32 of the tile's elements), so its
    # cost is hidden under the HBM stream; exact divide keeps ~1e-7 fidelity
    # (approx reciprocal would loosen the tolerance for no measurable gain).
    o_ref[...] = 1.0 / (1.0 + jnp.exp(-y))                   # sigmoid


def neural_network_forward(x, w1, b1, w2, b2, *, tile_rows=4096):
    """x: (B, 4) f32.  w1: (4, 4), b1: (4,), w2: (1, 4), b2: (1,) (PyTorch layout)."""
    B, F = x.shape
    assert F == 4, "module forward is only shape-consistent for num_features == 4"
    assert w1.shape == (4, F) and b1.shape == (4,), "linear1 params must be (4,4)/(4,)"
    assert w2.shape == (1, 4) and b2.shape == (1,), "linear2 params must be (1,4)/(1,)"

    # ---- batch tiling --------------------------------------------------------
    n_rows = pl.cdiv(B, _GROUPS)                   # 32 samples per lane-row
    tile_rows = max(8, 8 * pl.cdiv(tile_rows, 8))  # keep tile sublane-legal
    # >=2 grid steps whenever possible (so both v7x TensorCores get work) while
    # still using multi-MiB blocks for HBM efficiency at large batch.
    tr = min(tile_rows, max(8, 8 * pl.cdiv(pl.cdiv(n_rows, 2), 8)))
    rows_p = tr * pl.cdiv(n_rows, tr)
    bp = rows_p * _GROUPS

    # Zero-copy layout change: (B, 4) row-major == (B//32, 128) row-major.
    # Only the batch-remainder zero-pad copies (elided when B % (32*tr) == 0).
    if bp != B:
        x = jnp.pad(x, ((0, bp - B), (0, 0)))
    xr = x.reshape(rows_p, _LANES)

    # ---- fold the 20 scalar params into interleave-aware operands (tiny) -----
    eye = jnp.eye(_GROUPS, dtype=jnp.float32)
    # w1_big[4g+f, 4g'+k] = (g==g') * w1[k, f]   -> X_tile @ w1_big keeps layout.
    w1_big = jnp.einsum("gh,fk->gfhk", eye, jnp.transpose(w1)).reshape(_LANES, _LANES)
    b1_tiled = jnp.tile(b1, _GROUPS).reshape(1, _LANES)
    # w2_mat[4g+f, g'] = (g==g') * w2[0, f]      -> H_tile @ w2_mat compacts 4->1.
    w2_mat = jnp.einsum("gh,f->gfh", eye, w2[0]).reshape(_LANES, _GROUPS)

    smem = pl.BlockSpec(memory_space=pltpu.MemorySpace.SMEM)
    out = pl.pallas_call(
        _mlp_kernel,
        out_shape=jax.ShapeDtypeStruct((rows_p, _GROUPS), jnp.float32),
        grid=(rows_p // tr,),
        in_specs=[
            pl.BlockSpec((tr, _LANES), lambda i: (i, 0)),      # streamed batch tiles
            pl.BlockSpec((_LANES, _LANES), lambda i: (0, 0)),  # resident (fetched once)
            pl.BlockSpec((1, _LANES), lambda i: (0, 0)),
            pl.BlockSpec((_LANES, _GROUPS), lambda i: (0, 0)),
            smem,                                              # b2 scalar in SMEM
        ],
        out_specs=pl.BlockSpec((tr, _GROUPS), lambda i: (i, 0)),
        compiler_params=pltpu.CompilerParams(
            dimension_semantics=("parallel",),        # shard batch across TCs on v7x
            vmem_limit_bytes=32 * 1024 * 1024,        # safe on v5e/v6e/v7x
        ),
    )(xr, w1_big, b1_tiled, w2_mat, b2)

    # (rows_p, 32) row-major == (bp,) in sample order; slice off the padding.
    return out.reshape(bp, 1)[:B]


def init_params(key, num_features):
    """Deterministic init mimicking nn.Linear's uniform(-1/sqrt(fan_in), ...)."""
    k1, k2, k3, k4 = jax.random.split(key, 4)
    bound1 = 1.0 / jnp.sqrt(num_features)
    w1 = jax.random.uniform(k1, (4, num_features), jnp.float32, -bound1, bound1)
    b1 = jax.random.uniform(k2, (4,), jnp.float32, -bound1, bound1)
    bound2 = 1.0 / jnp.sqrt(4.0)  # linear2 effectively consumes the 4-wide hidden
    w2 = jax.random.uniform(k3, (1, 4), jnp.float32, -bound2, bound2)
    b2 = jax.random.uniform(k4, (1,), jnp.float32, -bound2, bound2)
    return w1, b1, w2, b2


def reference_forward(x, w1, b1, w2, b2):
    hi = jax.lax.Precision.HIGHEST
    h = jnp.maximum(jnp.dot(x, w1.T, precision=hi) + b1, 0.0)
    return 1.0 / (1.0 + jnp.exp(-(jnp.dot(h, w2.T, precision=hi) + b2)))


if __name__ == "__main__":
    num_features = 4   # forced by the module's own forward (see note at top)

    key = jax.random.PRNGKey(0)
    kx, kp, kx2, kx3 = jax.random.split(key, 4)
    w1, b1, w2, b2 = init_params(kp, num_features)

    # Case 1: batch=300 -> padded to 2 grid steps (exercises padding + multi-step).
    x = jax.random.normal(kx, (300, num_features), jnp.float32)
    out = jax.block_until_ready(neural_network_forward(x, w1, b1, w2, b2))
    ref = reference_forward(x, w1, b1, w2, b2)
    assert out.shape == (300, 1)
    assert jnp.allclose(out, ref, atol=1e-5, rtol=1e-5), "mismatch vs reference (B=300)"

    # Case 2: tiny batch=8 -> single heavily padded tile.
    x2 = jax.random.normal(kx2, (8, num_features), jnp.float32)
    out2 = jax.block_until_ready(neural_network_forward(x2, w1, b1, w2, b2))
    ref2 = reference_forward(x2, w1, b1, w2, b2)
    assert out2.shape == (8, 1)
    assert jnp.allclose(out2, ref2, atol=1e-5, rtol=1e-5), "mismatch vs reference (B=8)"

    # Case 3: batch=512 -> divides evenly: zero-pad elided, 2 parallel grid steps.
    x3 = jax.random.normal(kx3, (512, num_features), jnp.float32)
    out3 = jax.block_until_ready(neural_network_forward(x3, w1, b1, w2, b2))
    ref3 = reference_forward(x3, w1, b1, w2, b2)
    assert out3.shape == (512, 1)
    assert jnp.allclose(out3, ref3, atol=1e-5, rtol=1e-5), "mismatch vs reference (B=512)"

    print("KERNEL_OK")
</pallas_src>

<mosaic_0001>
module attributes {stable_mosaic.version = 11 : i64} {
  func.func @_mlp_kernel(%arg0: i32, %arg1: memref<8x128xf32, #tpu.memory_space<vmem>>, %arg2: memref<128x128xf32, #tpu.memory_space<vmem>>, %arg3: memref<1x128xf32, #tpu.memory_space<vmem>>, %arg4: memref<128x32xf32, #tpu.memory_space<vmem>>, %arg5: memref<1xf32, #tpu.memory_space<smem>>, %arg6: memref<8x32xf32, #tpu.memory_space<vmem>>) attributes {dimension_semantics = [#tpu.dimension_semantics<parallel>], iteration_bounds = array<i64: 2>, scalar_prefetch = 0 : i64, scratch_operands = 0 : i64, tpu.core_type = #tpu.core_type<tc>, window_params = [{transform_indices = @transform_0, window_bounds = array<i64: 8, 128>}, {pipeline_mode = #tpu.pipeline_mode<synchronous>, transform_indices = @transform_1, window_bounds = array<i64: 128, 128>}, {pipeline_mode = #tpu.pipeline_mode<synchronous>, transform_indices = @transform_2, window_bounds = array<i64: 1, 128>}, {pipeline_mode = #tpu.pipeline_mode<synchronous>, transform_indices = @transform_3, window_bounds = array<i64: 128, 32>}, {transform_indices = @transform_4, window_bounds = array<i64: 1>}, {transform_indices = @transform_5, window_bounds = array<i64: 8, 32>}]} {
    %c0 = arith.constant 0 : index
    %c0_0 = arith.constant 0 : index
    %0 = vector.load %arg1[%c0, %c0_0] : memref<8x128xf32, #tpu.memory_space<vmem>>, vector<8x128xf32>
    %c0_1 = arith.constant 0 : index
    %c0_2 = arith.constant 0 : index
    %1 = vector.load %arg2[%c0_1, %c0_2] : memref<128x128xf32, #tpu.memory_space<vmem>>, vector<128x128xf32>
    %cst = arith.constant dense<0.000000e+00> : vector<8x128xf32>
    %2 = tpu.matmul %0, %1, %cst {dimension_numbers = #tpu.dot_dimension_numbers<[1], [0], [0], [1], [0, 0, 1, 1], [], []>, precision = #tpu.contract_precision<fp32>} : vector<8x128xf32>, vector<128x128xf32>, vector<8x128xf32> -> vector<8x128xf32>
    %c0_3 = arith.constant 0 : index
    %c0_4 = arith.constant 0 : index
    %3 = vector.load %arg3[%c0_3, %c0_4] : memref<1x128xf32, #tpu.memory_space<vmem>>, vector<1x128xf32>
    %4 = vector.broadcast %3 : vector<1x128xf32> to vector<8x128xf32>
    %5 = arith.addf %2, %4 : vector<8x128xf32>
    %cst_5 = arith.constant 0.000000e+00 : f32
    %6 = vector.broadcast %cst_5 : f32 to vector<8x128xf32>
    %7 = arith.maximumf %5, %6 : vector<8x128xf32>
    %c0_6 = arith.constant 0 : index
    %c0_7 = arith.constant 0 : index
    %8 = vector.load %arg4[%c0_6, %c0_7] : memref<128x32xf32, #tpu.memory_space<vmem>>, vector<128x32xf32>
    %cst_8 = arith.constant dense<0.000000e+00> : vector<8x32xf32>
    %9 = tpu.matmul %7, %8, %cst_8 {dimension_numbers = #tpu.dot_dimension_numbers<[1], [0], [0], [1], [0, 0, 1, 1], [], []>, precision = #tpu.contract_precision<fp32>} : vector<8x128xf32>, vector<128x32xf32>, vector<8x32xf32> -> vector<8x32xf32>
    %c0_9 = arith.constant 0 : index
    %10 = memref.load %arg5[%c0_9] : memref<1xf32, #tpu.memory_space<smem>>
    %11 = vector.broadcast %10 : f32 to vector<8x32xf32>
    %12 = arith.addf %9, %11 : vector<8x32xf32>
    %cst_10 = arith.constant 0.000000e+00 : f32
    %13 = vector.broadcast %cst_10 : f32 to vector<8x32xf32>
    %14 = arith.subf %13, %12 : vector<8x32xf32>
    %15 = math.exp %14 : vector<8x32xf32>
    %cst_11 = arith.constant 1.000000e+00 : f32
    %16 = vector.broadcast %cst_11 : f32 to vector<8x32xf32>
    %17 = arith.addf %16, %15 : vector<8x32xf32>
    %cst_12 = arith.constant 1.000000e+00 : f32
    %18 = vector.broadcast %cst_12 : f32 to vector<8x32xf32>
    %19 = arith.divf %18, %17 : vector<8x32xf32>
    %c0_13 = arith.constant 0 : index
    %c0_14 = arith.constant 0 : index
    %20 = vector.load %arg6[%c0_13, %c0_14] : memref<8x32xf32, #tpu.memory_space<vmem>>, vector<8x32xf32>
    tpu.vector_store %arg6[%c0_13, %c0_14], %19 {strides = array<i32>} : memref<8x32xf32, #tpu.memory_space<vmem>>, vector<8x32xf32>,
    return
  }
  func.func @transform_0(%arg0: i32) -> (i32, i32) {
    %c0_i32 = arith.constant 0 : i32
    %c0_i32_0 = arith.constant 0 : i32
    return %arg0, %c0_i32 : i32, i32
  }
  func.func @transform_1(%arg0: i32) -> (i32, i32) {
    %c0_i32 = arith.constant 0 : i32
    %c0_i32_0 = arith.constant 0 : i32
    %c0_i32_1 = arith.constant 0 : i32
    return %c0_i32, %c0_i32_0 : i32, i32
  }
  func.func @transform_2(%arg0: i32) -> (i32, i32) {
    %c0_i32 = arith.constant 0 : i32
    %c0_i32_0 = arith.constant 0 : i32
    %c0_i32_1 = arith.constant 0 : i32
    return %c0_i32, %c0_i32_0 : i32, i32
  }
  func.func @transform_3(%arg0: i32) -> (i32, i32) {
    %c0_i32 = arith.constant 0 : i32
    %c0_i32_0 = arith.constant 0 : i32
    %c0_i32_1 = arith.constant 0 : i32
    return %c0_i32, %c0_i32_0 : i32, i32
  }
  func.func @transform_4(%arg0: i32) -> i32 {
    %c0_i32 = arith.constant 0 : i32
    %c0_i32_0 = arith.constant 0 : i32
    return %c0_i32 : i32
  }
  func.func @transform_5(%arg0: i32) -> (i32, i32) {
    %c0_i32 = arith.constant 0 : i32
    %c0_i32_0 = arith.constant 0 : i32
    return %arg0, %c0_i32 : i32, i32
  }
}

</mosaic_0001>

<llo_original>
// kernel: tpu_custom_call.1
$region0: #{tpu_custom_call.1}
  #allocation0 [shape = 'u32[]', space=smem, size = 0x4, offset = 0x4, fixed_abs, tag = 'smem constant byte address 0x4 - core index']
  #allocation1 [shape = 'u32[144,128]{1,0:T(1,128)}', space=vmem, size = 0x12000, scoped, tag = 'internal scratch']
  #allocation2 [shape = 'f32[1]{0:T(128)S(6)}', space=smem, size = 0x200, scoped, tag = 'scoped memory for tpu_custom_call.1']
  %s0 = inlined_call_operand.vmem [shape: f32[16,128], index: 0, kind: input, shape index: {}]
  %s1 = inlined_call_operand.vmem [shape: f32[128,128], index: 1, kind: input, shape index: {}]
  %s2 = inlined_call_operand.vmem [shape: f32[1,128], index: 2, kind: input, shape index: {}]
  %s3 = inlined_call_operand.vmem [shape: f32[128,32], index: 3, kind: input, shape index: {}]
  %s4 = inlined_call_operand.<no memory space> [shape: f32[1], index: 4, kind: input, shape index: {}]
  %s5 = inlined_call_operand.hbm [shape: f32[16,32], index: 5, kind: output, shape index: {}]
  %s6 = sld [smem:[#allocation0]]
  $region53: #{tpu_custom_call.1} parent=0
    _
  %s8 = ssub.s32 1, %s6
  %s9 = scalar_select 0, %s8, %s6
  %10 = sst [smem:[#allocation2]] %s4
  $region1: #{tpu_custom_call.1} parent=0
    #allocation3 [shape = 'u8[8192]{0}', space=vmem, size = 0x2000, scoped, tag = 'output window, operand 0']
    #allocation4 [shape = 's32[2]{0}', space=sflag, size = 0x8, scoped, tag = 'scoped memory for tpu_custom_call.1']
    %11 = vsyncpa [#allocation4], 0
    %s12 = scalar_lea.sflag [#allocation4], 1
    %13 = vsyncpa %s12, 0
    loop: start=0, step=1, limit=4
    $region2: #{tpu_custom_call.1} parent=1 // loop_pre_header
      _
    $region3: #{tpu_custom_call.1} parent=1 // loop_header
      %s15 = sphi 0, %s19
      %p16 = scmp.ge.s32.totalorder %s15, 4
      %s25 = sphi 0, %s27
      %s28 = sphi 0, %s25
      %s29 = sphi 0, %s28
      %s45 = sphi 0, %s29
      %s49 = sphi 0, %s49
      %s51 = sphi 0, %s49
      %s52 = sphi 0, %s51
      %s66 = sphi 0, %s52
      %s70 = sphi 0, %s70
      %s72 = sphi 0, %s70
      %s73 = sphi 0, %s72
      %s87 = sphi 0, %s73
      %s91 = sphi 0, %s91
      %s93 = sphi 0, %s91
      %s94 = sphi 0, %s93
      %s108 = sphi 0, %s94
      %s112 = sphi 0, %s112
      %s114 = sphi 0, %s112
      %s115 = sphi 0, %s114
      %s129 = sphi 0, %s115
      %s135 = sphi 0, %s137
      %s138 = sphi 0, %s135
      %s139 = sphi 0, %s138
      %s155 = sphi 0, %s139
    $region4: #{tpu_custom_call.1} parent=1 // loop_header_branch
      %18 = sbr.rel (%p16) target = $region8
    $region5: #{tpu_custom_call.1} parent=1 // loop_body
      %s20 = ssub.s32 %s15, 1
      %s21 = ssub.s32 %s15, 2
      %s22 = sadd.s32 %s15, 1
      %s23 = ssub.s32 %s15, %s22
      %p24 = scmp.eq.s32.totalorder %s23, 0
      %s26 = sadd.s32 %s25, 1
      %s27 = scalar_select %p24, %s25, %s26
      %p30 = pneg %p24
      %p31 = scmp.eq.s32.totalorder %s15, 1
      %p32 = por %p30, %p31
      %p33 = scmp.ne.s32.totalorder %s25, %s28
      %p34 = scmp.eq.s32.totalorder %s15, 0
      %p35 = por %p33, %p34
      %p36 = scmp.ne.s32.totalorder %s25, %s28
      %p37 = scmp.eq.s32.totalorder %s20, 1
      %p38 = por %p36, %p37
      %p39 = scmp.ne.s32.totalorder %s28, %s29
      %p40 = scmp.eq.s32.totalorder %s20, 0
      %p41 = por %p39, %p40
      %p42 = scmp.ne.s32.totalorder %s28, %s29
      %p43 = scmp.eq.s32.totalorder %s21, 1
      %p44 = por %p42, %p43
      %p46 = scmp.ne.s32.totalorder %s29, %s45
      %p47 = scmp.eq.s32.totalorder %s21, 0
      %p48 = por %p46, %p47
      %s50 = sadd.s32 %s49, 1
      %p53 = scmp.eq.s32.totalorder %s15, 1
      %p54 = scmp.ne.s32.totalorder %s49, %s51
      %p55 = scmp.eq.s32.totalorder %s15, 0
      %p56 = por %p54, %p55
      %p57 = scmp.ne.s32.totalorder %s49, %s51
      %p58 = scmp.eq.s32.totalorder %s20, 1
      %p59 = por %p57, %p58
      %p60 = scmp.ne.s32.totalorder %s51, %s52
      %p61 = scmp.eq.s32.totalorder %s20, 0
      %p62 = por %p60, %p61
      %p63 = scmp.ne.s32.totalorder %s51, %s52
      %p64 = scmp.eq.s32.totalorder %s21, 1
      %p65 = por %p63, %p64
      %p67 = scmp.ne.s32.totalorder %s52, %s66
      %p68 = scmp.eq.s32.totalorder %s21, 0
      %p69 = por %p67, %p68
      %s71 = sadd.s32 %s70, 1
      %p74 = scmp.eq.s32.totalorder %s15, 1
      %p75 = scmp.ne.s32.totalorder %s70, %s72
      %p76 = scmp.eq.s32.totalorder %s15, 0
      %p77 = por %p75, %p76
      %p78 = scmp.ne.s32.totalorder %s70, %s72
      %p79 = scmp.eq.s32.totalorder %s20, 1
      %p80 = por %p78, %p79
      %p81 = scmp.ne.s32.totalorder %s72, %s73
      %p82 = scmp.eq.s32.totalorder %s20, 0
      %p83 = por %p81, %p82
      %p84 = scmp.ne.s32.totalorder %s72, %s73
      %p85 = scmp.eq.s32.totalorder %s21, 1
      %p86 = por %p84, %p85
      %p88 = scmp.ne.s32.totalorder %s73, %s87
      %p89 = scmp.eq.s32.totalorder %s21, 0
      %p90 = por %p88, %p89
      %s92 = sadd.s32 %s91, 1
      %p95 = scmp.eq.s32.totalorder %s15, 1
      %p96 = scmp.ne.s32.totalorder %s91, %s93
      %p97 = scmp.eq.s32.totalorder %s15, 0
      %p98 = por %p96, %p97
      %p99 = scmp.ne.s32.totalorder %s91, %s93
      %p100 = scmp.eq.s32.totalorder %s20, 1
      %p101 = por %p99, %p100
      %p102 = scmp.ne.s32.totalorder %s93, %s94
      %p103 = scmp.eq.s32.totalorder %s20, 0
      %p104 = por %p102, %p103
      %p105 = scmp.ne.s32.totalorder %s93, %s94
      %p106 = scmp.eq.s32.totalorder %s21, 1
      %p107 = por %p105, %p106
      %p109 = scmp.ne.s32.totalorder %s94, %s108
      %p110 = scmp.eq.s32.totalorder %s21, 0
      %p111 = por %p109, %p110
      %s113 = sadd.s32 %s112, 1
      %p116 = scmp.eq.s32.totalorder %s15, 1
      %p117 = scmp.ne.s32.totalorder %s112, %s114
      %p118 = scmp.eq.s32.totalorder %s15, 0
      %p119 = por %p117, %p118
      %p120 = scmp.ne.s32.totalorder %s112, %s114
      %p121 = scmp.eq.s32.totalorder %s20, 1
      %p122 = por %p120, %p121
      %p123 = scmp.ne.s32.totalorder %s114, %s115
      %p124 = scmp.eq.s32.totalorder %s20, 0
      %p125 = por %p123, %p124
      %p126 = scmp.ne.s32.totalorder %s114, %s115
      %p127 = scmp.eq.s32.totalorder %s21, 1
      %p128 = por %p126, %p127
      %p130 = scmp.ne.s32.totalorder %s115, %s129
      %p131 = scmp.eq.s32.totalorder %s21, 0
      %p132 = por %p130, %p131
      %s133 = ssub.s32 %s15, %s22
      %p134 = scmp.eq.s32.totalorder %s133, 0
      %s136 = sadd.s32 %s135, 1
      %s137 = scalar_select %p134, %s135, %s136
      %p140 = pneg %p134
      %p141 = scmp.eq.s32.totalorder %s15, 1
      %p142 = por %p140, %p141
      %p143 = scmp.ne.s32.totalorder %s135, %s138
      %p144 = scmp.eq.s32.totalorder %s15, 0
      %p145 = por %p143, %p144
      %p146 = scmp.ne.s32.totalorder %s135, %s138
      %p147 = scmp.eq.s32.totalorder %s20, 1
      %p148 = por %p146, %p147
      %p149 = scmp.ne.s32.totalorder %s138, %s139
      %p150 = scmp.eq.s32.totalorder %s20, 0
      %p151 = por %p149, %p150
      %p152 = scmp.ne.s32.totalorder %s138, %s139
      %p153 = scmp.eq.s32.totalorder %s21, 1
      %p154 = por %p152, %p153
      %p156 = scmp.ne.s32.totalorder %s139, %s155
      %p157 = scmp.eq.s32.totalorder %s21, 0
      %p158 = por %p156, %p157
      %p159 = scmp.le.s32.totalorder 1, %s15
      %p160 = scmp.lt.s32.totalorder %s15, 3
      %p161 = pnand %p159, %p160
      %p162 = pneg %p161
      // Predicated region
      $region9: #{tpu_custom_call.1} parent=5 // pred_check
        _
      $region10: #{tpu_custom_call.1} parent=5 // pred_check_branch
        %164 = sbr.rel (%p161) target = $region12
      $region11: #{tpu_custom_call.1} parent=5 // pred_region
        %s165 = ssub.s32 %s15, 1
        // Predicated region
        $region13: #{tpu_custom_call.1} parent=11 // pred_check
          %p166 = pneg %p62
        $region14: #{tpu_custom_call.1} parent=11 // pred_check_branch
          %168 = sbr.rel (%p166) target = $region16
        $region15: #{tpu_custom_call.1} parent=11 // pred_region
          _
        $region16: #{tpu_custom_call.1} parent=11 // pred_fallthru
          _
        // Predicated region
        $region17: #{tpu_custom_call.1} parent=11 // pred_check
          %p169 = pneg %p83
        $region18: #{tpu_custom_call.1} parent=11 // pred_check_branch
          %171 = sbr.rel (%p169) target = $region20
        $region19: #{tpu_custom_call.1} parent=11 // pred_region
          _
        $region20: #{tpu_custom_call.1} parent=11 // pred_fallthru
          _
        // Predicated region
        $region21: #{tpu_custom_call.1} parent=11 // pred_check
          %p172 = pneg %p104
        $region22: #{tpu_custom_call.1} parent=11 // pred_check_branch
          %174 = sbr.rel (%p172) target = $region24
        $region23: #{tpu_custom_call.1} parent=11 // pred_region
          _
        $region24: #{tpu_custom_call.1} parent=11 // pred_fallthru
          _
        // Predicated region
        $region25: #{tpu_custom_call.1} parent=11 // pred_check
          %p175 = pneg %p125
        $region26: #{tpu_custom_call.1} parent=11 // pred_check_branch
          %177 = sbr.rel (%p175) target = $region28
        $region27: #{tpu_custom_call.1} parent=11 // pred_region
          _
        $region28: #{tpu_custom_call.1} parent=11 // pred_fallthru
          _
      $region12: #{tpu_custom_call.1} parent=5 // pred_fallthru
        _
      %p178 = scmp.lt.s32.totalorder %s15, 2
      // Predicated region
      $region29: #{tpu_custom_call.1} parent=5 // pred_check
        %p179 = pneg %p178
      $region30: #{tpu_custom_call.1} parent=5 // pred_check_branch
        %181 = sbr.rel (%p179) target = $region32
      $region31: #{tpu_custom_call.1} parent=5 // pred_region
        // Predicated region
        $region33: #{tpu_custom_call.1} parent=31 // pred_check
          %p182 = pneg %p35
        $region34: #{tpu_custom_call.1} parent=31 // pred_check_branch
          %184 = sbr.rel (%p182) target = $region36
        $region35: #{tpu_custom_call.1} parent=31 // pred_region
          %p185 = scmp.lt.s32.totalorder %s15, 1
          %s186 = scalar_select %p185, %s15, 1
          %s187 = smul.addr %s186, 8
          %s188 = scalar_lea.vmem %s0, %s187
        $region36: #{tpu_custom_call.1} parent=31 // pred_fallthru
          _
      $region32: #{tpu_custom_call.1} parent=5 // pred_fallthru
        _
      %p189 = scmp.le.s32.totalorder 1, %s15
      %p190 = scmp.lt.s32.totalorder %s15, 3
      %p191 = pnand %p189, %p190
      %p192 = pneg %p191
      // Predicated region
      $region37: #{tpu_custom_call.1} parent=5 // pred_check
        _
      $region38: #{tpu_custom_call.1} parent=5 // pred_check_branch
        %194 = sbr.rel (%p191) target = $region40
      $region39: #{tpu_custom_call.1} parent=5 // pred_region
        %s195 = ssub.s32 %s15, 1
        %p196 = scmp.lt.s32.totalorder %s20, 1
        %s197 = scalar_select %p196, %s20, 1
        %s198 = smul.addr %s197, 8
        %s199 = scalar_lea.vmem %s0, %s198
        %p200 = pneg %p41
        %p201 = pneg %p38
        %p202 = pneg %p62
        %p203 = pneg %p59
        %p204 = pneg %p83
        %p205 = pneg %p80
        %p206 = pneg %p104
        %p207 = pneg %p101
        %p208 = pneg %p125
        %p209 = pneg %p122
        %p210 = pneg %p151
        %p211 = pneg %p148
        %s212 = sand.u32 %s138, 1
        %s213 = scalar_lea.sflag [#allocation4], %s212
        %s214 = sand.u32 %s138, 1
        %s215 = smul.addr %s214, 8
        %s216 = scalar_lea.vmem [#allocation3], %s215
        %p217 = scmp.lt.s32.totalorder %s20, 1
        %s218 = scalar_select %p217, %s20, 1
        %s219 = smul.addr %s218, 8
        %s220 = scalar_lea.vmem %s0, %s219
        %v221 = vld [vmem:[%s220] sm:$0xff]
        %v222 = vld [vmem:[%s1] sm:$0xff]
        %v223 = vld [vmem:[%s1 + $0x8] sm:$0xff]
        %v224 = vld [vmem:[%s1 + $0x10] sm:$0xff]
        %v225 = vld [vmem:[%s1 + $0x18] sm:$0xff]
        %v226 = vld [vmem:[%s1 + $0x20] sm:$0xff]
        %v227 = vld [vmem:[%s1 + $0x28] sm:$0xff]
        %v228 = vld [vmem:[%s1 + $0x30] sm:$0xff]
        %v229 = vld [vmem:[%s1 + $0x38] sm:$0xff]
        %v230 = vld [vmem:[%s1 + $0x40] sm:$0xff]
        %v231 = vld [vmem:[%s1 + $0x48] sm:$0xff]
        %v232 = vld [vmem:[%s1 + $0x50] sm:$0xff]
        %v233 = vld [vmem:[%s1 + $0x58] sm:$0xff]
        %v234 = vld [vmem:[%s1 + $0x60] sm:$0xff]
        %v235 = vld [vmem:[%s1 + $0x68] sm:$0xff]
        %v236 = vld [vmem:[%s1 + $0x70] sm:$0xff]
        %v237 = vld [vmem:[%s1 + $0x78] sm:$0xff]
        %v238 = vld [vmem:[%s2] sm:$0x1]
        %v240 = vlaneseq
        %v241 = vshrl.u32 %v240, 7
        %v242 = vsub.s32 0, %v241
        %v243 = vrot.slane %v238, %v242
        %245 = vmatprep.subr.mxu0 0.0
        %v246 = vand.u32 %v222, 4294901760
        %247 = vmatpush1.msra.mxu0 %v246
        %248 = vmatprep.subr.mxu0 0.0
        %v249 = vand.u32 %v223, 4294901760
        %250 = vmatpush1.msra.mxu0 %v249
        %251 = vmatprep.subr.mxu0 0.0
        %v252 = vand.u32 %v224, 4294901760
        %253 = vmatpush1.msra.mxu0 %v252
        %254 = vmatprep.subr.mxu0 0.0
        %v255 = vand.u32 %v225, 4294901760
        %256 = vmatpush1.msra.mxu0 %v255
        %257 = vmatprep.subr.mxu0 0.0
        %v258 = vand.u32 %v226, 4294901760
        %259 = vmatpush1.msra.mxu0 %v258
        %260 = vmatprep.subr.mxu0 0.0
        %v261 = vand.u32 %v227, 4294901760
        %262 = vmatpush1.msra.mxu0 %v261
        %263 = vmatprep.subr.mxu0 0.0
        %v264 = vand.u32 %v228, 4294901760
        %265 = vmatpush1.msra.mxu0 %v264
        %266 = vmatprep.subr.mxu0 0.0
        %v267 = vand.u32 %v229, 4294901760
        %268 = vmatpush1.msra.mxu0 %v267
        %269 = vmatprep.subr.mxu0 0.0
        %v270 = vand.u32 %v230, 4294901760
        %271 = vmatpush1.msra.mxu0 %v270
        %272 = vmatprep.subr.mxu0 0.0
        %v273 = vand.u32 %v231, 4294901760
        %274 = vmatpush1.msra.mxu0 %v273
        %275 = vmatprep.subr.mxu0 0.0
        %v276 = vand.u32 %v232, 4294901760
        %277 = vmatpush1.msra.mxu0 %v276
        %278 = vmatprep.subr.mxu0 0.0
        %v279 = vand.u32 %v233, 4294901760
        %280 = vmatpush1.msra.mxu0 %v279
        %281 = vmatprep.subr.mxu0 0.0
        %v282 = vand.u32 %v234, 4294901760
        %283 = vmatpush1.msra.mxu0 %v282
        %284 = vmatprep.subr.mxu0 0.0
        %v285 = vand.u32 %v235, 4294901760
        %286 = vmatpush1.msra.mxu0 %v285
        %287 = vmatprep.subr.mxu0 0.0
        %v288 = vand.u32 %v236, 4294901760
        %289 = vmatpush1.msra.mxu0 %v288
        %290 = vmatprep.subr.mxu0 0.0
        %v291 = vand.u32 %v237, 4294901760
        %292 = vmatpush1.msra.mxu0 %v291
        %293 = vmatprep.subr.mxu0 0.0
        %294 = vmatpush1.msra.mxu0 0.0
        %295 = vmatprep.subr.mxu0 0.0
        %296 = vmatpush1.msra.mxu0 0.0
        %297 = vmatprep.subr.mxu0 0.0
        %298 = vmatpush1.msra.mxu0 0.0
        %299 = vmatprep.subr.mxu0 0.0
        %300 = vmatpush1.msra.mxu0 0.0
        %301 = vmatprep.subr.mxu0 0.0
        %302 = vmatpush1.msra.mxu0 0.0
        %303 = vmatprep.subr.mxu0 0.0
        %304 = vmatpush1.msra.mxu0 0.0
        %305 = vmatprep.subr.mxu0 0.0
        %306 = vmatpush1.msra.mxu0 0.0
        %307 = vmatprep.subr.mxu0 0.0
        %308 = vmatpush1.msra.mxu0 0.0
        %309 = vmatprep.subr.mxu0 0.0
        %310 = vmatpush1.msra.mxu0 0.0
        %311 = vmatprep.subr.mxu0 0.0
        %312 = vmatpush1.msra.mxu0 0.0
        %313 = vmatprep.subr.mxu0 0.0
        %314 = vmatpush1.msra.mxu0 0.0
        %315 = vmatprep.subr.mxu0 0.0
        %316 = vmatpush1.msra.mxu0 0.0
        %317 = vmatprep.subr.mxu0 0.0
        %318 = vmatpush1.msra.mxu0 0.0
        %319 = vmatprep.subr.mxu0 0.0
        %320 = vmatpush1.msra.mxu0 0.0
        %321 = vmatprep.subr.mxu0 0.0
        %322 = vmatpush1.msra.mxu0 0.0
        %323 = vmatprep.subr.mxu0 0.0
        %324 = vmatpush1.msra.mxu0 0.0
        %325 = vmatprep.mubr.f32.mxu0 0.0
        %v326 = vand.u32 %v221, 4294901760
        %v327 = vsub.f32 %v221, %v326
        %v328 = vand.u32 %v327, 4294901760
        %v329 = vsub.f32 %v327, %v328
        %v330 = vand.u32 %v329, 4294901760
        %331 = vmatmul.mubr.f32.gmra.mrb[0].mxu0 %v330
        %v332 = vpop.f32.mrb[0].mxu0
        %v333 = vadd.f32 %v243, %v332
        %v334 = vpop.f32.mrb[0].mxu0
        %335 = vdwg.mxu0
        %336 = vmatprep.subr.mxu0 0.0
        %v337 = vand.u32 %v222, 4294901760
        %v338 = vsub.f32 %v222, %v337
        %v339 = vand.u32 %v338, 4294901760
        %v340 = vsub.f32 %v338, %v339
        %v341 = vand.u32 %v340, 4294901760
        %342 = vmatpush1.msra.mxu0 %v341
        %343 = vmatprep.subr.mxu0 0.0
        %v344 = vand.u32 %v223, 4294901760
        %v345 = vsub.f32 %v223, %v344
        %v346 = vand.u32 %v345, 4294901760
        %v347 = vsub.f32 %v345, %v346
        %v348 = vand.u32 %v347, 4294901760
        %349 = vmatpush1.msra.mxu0 %v348
        %350 = vmatprep.subr.mxu0 0.0
        %v351 = vand.u32 %v224, 4294901760
        %v352 = vsub.f32 %v224, %v351
        %v353 = vand.u32 %v352, 4294901760
        %v354 = vsub.f32 %v352, %v353
        %v355 = vand.u32 %v354, 4294901760
        %356 = vmatpush1.msra.mxu0 %v355
        %357 = vmatprep.subr.mxu0 0.0
        %v358 = vand.u32 %v225, 4294901760
        %v359 = vsub.f32 %v225, %v358
        %v360 = vand.u32 %v359, 4294901760
        %v361 = vsub.f32 %v359, %v360
        %v362 = vand.u32 %v361, 4294901760
        %363 = vmatpush1.msra.mxu0 %v362
        %364 = vmatprep.subr.mxu0 0.0
        %v365 = vand.u32 %v226, 4294901760
        %v366 = vsub.f32 %v226, %v365
        %v367 = vand.u32 %v366, 4294901760
        %v368 = vsub.f32 %v366, %v367
        %v369 = vand.u32 %v368, 4294901760
        %370 = vmatpush1.msra.mxu0 %v369
        %371 = vmatprep.subr.mxu0 0.0
        %v372 = vand.u32 %v227, 4294901760
        %v373 = vsub.f32 %v227, %v372
        %v374 = vand.u32 %v373, 4294901760
        %v375 = vsub.f32 %v373, %v374
        %v376 = vand.u32 %v375, 4294901760
        %377 = vmatpush1.msra.mxu0 %v376
        %378 = vmatprep.subr.mxu0 0.0
        %v379 = vand.u32 %v228, 4294901760
        %v380 = vsub.f32 %v228, %v379
        %v381 = vand.u32 %v380, 4294901760
        %v382 = vsub.f32 %v380, %v381
        %v383 = vand.u32 %v382, 4294901760
        %384 = vmatpush1.msra.mxu0 %v383
        %385 = vmatprep.subr.mxu0 0.0
        %v386 = vand.u32 %v229, 4294901760
        %v387 = vsub.f32 %v229, %v386
        %v388 = vand.u32 %v387, 4294901760
        %v389 = vsub.f32 %v387, %v388
        %v390 = vand.u32 %v389, 4294901760
        %391 = vmatpush1.msra.mxu0 %v390
        %392 = vmatprep.subr.mxu0 0.0
        %v393 = vand.u32 %v230, 4294901760
        %v394 = vsub.f32 %v230, %v393
        %v395 = vand.u32 %v394, 4294901760
        %v396 = vsub.f32 %v394, %v395
        %v397 = vand.u32 %v396, 4294901760
        %398 = vmatpush1.msra.mxu0 %v397
        %399 = vmatprep.subr.mxu0 0.0
        %v400 = vand.u32 %v231, 4294901760
        %v401 = vsub.f32 %v231, %v400
        %v402 = vand.u32 %v401, 4294901760
        %v403 = vsub.f32 %v401, %v402
        %v404 = vand.u32 %v403, 4294901760
        %405 = vmatpush1.msra.mxu0 %v404
        %406 = vmatprep.subr.mxu0 0.0
        %v407 = vand.u32 %v232, 4294901760
        %v408 = vsub.f32 %v232, %v407
        %v409 = vand.u32 %v408, 4294901760
        %v410 = vsub.f32 %v408, %v409
        %v411 = vand.u32 %v410, 4294901760
        %412 = vmatpush1.msra.mxu0 %v411
        %413 = vmatprep.subr.mxu0 0.0
        %v414 = vand.u32 %v233, 4294901760
        %v415 = vsub.f32 %v233, %v414
        %v416 = vand.u32 %v415, 4294901760
        %v417 = vsub.f32 %v415, %v416
        %v418 = vand.u32 %v417, 4294901760
        %419 = vmatpush1.msra.mxu0 %v418
        %420 = vmatprep.subr.mxu0 0.0
        %v421 = vand.u32 %v234, 4294901760
        %v422 = vsub.f32 %v234, %v421
        %v423 = vand.u32 %v422, 4294901760
        %v424 = vsub.f32 %v422, %v423
        %v425 = vand.u32 %v424, 4294901760
        %426 = vmatpush1.msra.mxu0 %v425
        %427 = vmatprep.subr.mxu0 0.0
        %v428 = vand.u32 %v235, 4294901760
        %v429 = vsub.f32 %v235, %v428
        %v430 = vand.u32 %v429, 4294901760
        %v431 = vsub.f32 %v429, %v430
        %v432 = vand.u32 %v431, 4294901760
        %433 = vmatpush1.msra.mxu0 %v432
        %434 = vmatprep.subr.mxu0 0.0
        %v435 = vand.u32 %v236, 4294901760
        %v436 = vsub.f32 %v236, %v435
        %v437 = vand.u32 %v436, 4294901760
        %v438 = vsub.f32 %v436, %v437
        %v439 = vand.u32 %v438, 4294901760
        %440 = vmatpush1.msra.mxu0 %v439
        %441 = vmatprep.subr.mxu0 0.0
        %v442 = vand.u32 %v237, 4294901760
        %v443 = vsub.f32 %v237, %v442
        %v444 = vand.u32 %v443, 4294901760
        %v445 = vsub.f32 %v443, %v444
        %v446 = vand.u32 %v445, 4294901760
        %447 = vmatpush1.msra.mxu0 %v446
        %448 = vmatprep.subr.mxu0 0.0
        %449 = vmatpush1.msra.mxu0 0.0
        %450 = vmatprep.subr.mxu0 0.0
        %451 = vmatpush1.msra.mxu0 0.0
        %452 = vmatprep.subr.mxu0 0.0
        %453 = vmatpush1.msra.mxu0 0.0
        %454 = vmatprep.subr.mxu0 0.0
        %455 = vmatpush1.msra.mxu0 0.0
        %456 = vmatprep.subr.mxu0 0.0
        %457 = vmatpush1.msra.mxu0 0.0
        %458 = vmatprep.subr.mxu0 0.0
        %459 = vmatpush1.msra.mxu0 0.0
        %460 = vmatprep.subr.mxu0 0.0
        %461 = vmatpush1.msra.mxu0 0.0
        %462 = vmatprep.subr.mxu0 0.0
        %463 = vmatpush1.msra.mxu0 0.0
        %464 = vmatprep.subr.mxu0 0.0
        %465 = vmatpush1.msra.mxu0 0.0
        %466 = vmatprep.subr.mxu0 0.0
        %467 = vmatpush1.msra.mxu0 0.0
        %468 = vmatprep.subr.mxu0 0.0
        %469 = vmatpush1.msra.mxu0 0.0
        %470 = vmatprep.subr.mxu0 0.0
        %471 = vmatpush1.msra.mxu0 0.0
        %472 = vmatprep.subr.mxu0 0.0
        %473 = vmatpush1.msra.mxu0 0.0
        %474 = vmatprep.subr.mxu0 0.0
        %475 = vmatpush1.msra.mxu0 0.0
        %476 = vmatprep.subr.mxu0 0.0
        %477 = vmatpush1.msra.mxu0 0.0
        %478 = vmatprep.subr.mxu0 0.0
        %479 = vmatpush1.msra.mxu0 0.0
        %480 = vmatprep.mubr.f32.mxu0 0.0
        %v481 = vand.u32 %v221, 4294901760
        %482 = vmatmul.mubr.f32.gmra.mrb[0].mxu0 %v481
        %v483 = vpop.f32.mrb[0].mxu0
        %v484 = vadd.f32 %v333, %v483
        %v485 = vpop.f32.mrb[0].mxu0
        %486 = vdwg.mxu0
        %487 = vmatprep.subr.mxu0 0.0
        %v488 = vand.u32 %v222, 4294901760
        %v489 = vsub.f32 %v222, %v488
        %490 = vmatpush1.msra.mxu0 %v489
        %491 = vmatprep.subr.mxu0 0.0
        %v492 = vand.u32 %v223, 4294901760
        %v493 = vsub.f32 %v223, %v492
        %494 = vmatpush1.msra.mxu0 %v493
        %495 = vmatprep.subr.mxu0 0.0
        %v496 = vand.u32 %v224, 4294901760
        %v497 = vsub.f32 %v224, %v496
        %498 = vmatpush1.msra.mxu0 %v497
        %499 = vmatprep.subr.mxu0 0.0
        %v500 = vand.u32 %v225, 4294901760
        %v501 = vsub.f32 %v225, %v500
        %502 = vmatpush1.msra.mxu0 %v501
        %503 = vmatprep.subr.mxu0 0.0
        %v504 = vand.u32 %v226, 4294901760
        %v505 = vsub.f32 %v226, %v504
        %506 = vmatpush1.msra.mxu0 %v505
        %507 = vmatprep.subr.mxu0 0.0
        %v508 = vand.u32 %v227, 4294901760
        %v509 = vsub.f32 %v227, %v508
        %510 = vmatpush1.msra.mxu0 %v509
        %511 = vmatprep.subr.mxu0 0.0
        %v512 = vand.u32 %v228, 4294901760
        %v513 = vsub.f32 %v228, %v512
        %514 = vmatpush1.msra.mxu0 %v513
        %515 = vmatprep.subr.mxu0 0.0
        %v516 = vand.u32 %v229, 4294901760
        %v517 = vsub.f32 %v229, %v516
        %518 = vmatpush1.msra.mxu0 %v517
        %519 = vmatprep.subr.mxu0 0.0
        %v520 = vand.u32 %v230, 4294901760
        %v521 = vsub.f32 %v230, %v520
        %522 = vmatpush1.msra.mxu0 %v521
        %523 = vmatprep.subr.mxu0 0.0
        %v524 = vand.u32 %v231, 4294901760
        %v525 = vsub.f32 %v231, %v524
        %526 = vmatpush1.msra.mxu0 %v525
        %527 = vmatprep.subr.mxu0 0.0
        %v528 = vand.u32 %v232, 4294901760
        %v529 = vsub.f32 %v232, %v528
        %530 = vmatpush1.msra.mxu0 %v529
        %531 = vmatprep.subr.mxu0 0.0
        %v532 = vand.u32 %v233, 4294901760
        %v533 = vsub.f32 %v233, %v532
        %534 = vmatpush1.msra.mxu0 %v533
        %535 = vmatprep.subr.mxu0 0.0
        %v536 = vand.u32 %v234, 4294901760
        %v537 = vsub.f32 %v234, %v536
        %538 = vmatpush1.msra.mxu0 %v537
        %539 = vmatprep.subr.mxu0 0.0
        %v540 = vand.u32 %v235, 4294901760
        %v541 = vsub.f32 %v235, %v540
        %542 = vmatpush1.msra.mxu0 %v541
        %543 = vmatprep.subr.mxu0 0.0
        %v544 = vand.u32 %v236, 4294901760
        %v545 = vsub.f32 %v236, %v544
        %546 = vmatpush1.msra.mxu0 %v545
        %547 = vmatprep.subr.mxu0 0.0
        %v548 = vand.u32 %v237, 4294901760
        %v549 = vsub.f32 %v237, %v548
        %550 = vmatpush1.msra.mxu0 %v549
        %551 = vmatprep.subr.mxu0 0.0
        %552 = vmatpush1.msra.mxu0 0.0
        %553 = vmatprep.subr.mxu0 0.0
        %554 = vmatpush1.msra.mxu0 0.0
        %555 = vmatprep.subr.mxu0 0.0
        %556 = vmatpush1.msra.mxu0 0.0
        %557 = vmatprep.subr.mxu0 0.0
        %558 = vmatpush1.msra.mxu0 0.0
        %559 = vmatprep.subr.mxu0 0.0
        %560 = vmatpush1.msra.mxu0 0.0
        %561 = vmatprep.subr.mxu0 0.0
        %562 = vmatpush1.msra.mxu0 0.0
        %563 = vmatprep.subr.mxu0 0.0
        %564 = vmatpush1.msra.mxu0 0.0
        %565 = vmatprep.subr.mxu0 0.0
        %566 = vmatpush1.msra.mxu0 0.0
        %567 = vmatprep.subr.mxu0 0.0
        %568 = vmatpush1.msra.mxu0 0.0
        %569 = vmatprep.subr.mxu0 0.0
        %570 = vmatpush1.msra.mxu0 0.0
        %571 = vmatprep.subr.mxu0 0.0
        %572 = vmatpush1.msra.mxu0 0.0
        %573 = vmatprep.subr.mxu0 0.0
        %574 = vmatpush1.msra.mxu0 0.0
        %575 = vmatprep.subr.mxu0 0.0
        %576 = vmatpush1.msra.mxu0 0.0
        %577 = vmatprep.subr.mxu0 0.0
        %578 = vmatpush1.msra.mxu0 0.0
        %579 = vmatprep.subr.mxu0 0.0
        %580 = vmatpush1.msra.mxu0 0.0
        %581 = vmatprep.subr.mxu0 0.0
        %582 = vmatpush1.msra.mxu0 0.0
        %583 = vmatprep.mubr.f32.mxu0 0.0
        %v584 = vand.u32 %v221, 4294901760
        %v585 = vsub.f32 %v221, %v584
        %586 = vmatmul.mubr.f32.gmra.mrb[0].mxu0 %v585
        %v587 = vpop.f32.mrb[0].mxu0
        %v588 = vadd.f32 %v484, %v587
        %v589 = vpop.f32.mrb[0].mxu0
        %590 = vdwg.mxu0
        %591 = vmatprep.subr.mxu0 0.0
        %v592 = vand.u32 %v222, 4294901760
        %593 = vmatpush1.msra.mxu0 %v592
        %594 = vmatprep.subr.mxu0 0.0
        %v595 = vand.u32 %v223, 4294901760
        %596 = vmatpush1.msra.mxu0 %v595
        %597 = vmatprep.subr.mxu0 0.0
        %v598 = vand.u32 %v224, 4294901760
        %599 = vmatpush1.msra.mxu0 %v598
        %600 = vmatprep.subr.mxu0 0.0
        %v601 = vand.u32 %v225, 4294901760
        %602 = vmatpush1.msra.mxu0 %v601
        %603 = vmatprep.subr.mxu0 0.0
        %v604 = vand.u32 %v226, 4294901760
        %605 = vmatpush1.msra.mxu0 %v604
        %606 = vmatprep.subr.mxu0 0.0
        %v607 = vand.u32 %v227, 4294901760
        %608 = vmatpush1.msra.mxu0 %v607
        %609 = vmatprep.subr.mxu0 0.0
        %v610 = vand.u32 %v228, 4294901760
        %611 = vmatpush1.msra.mxu0 %v610
        %612 = vmatprep.subr.mxu0 0.0
        %v613 = vand.u32 %v229, 4294901760
        %614 = vmatpush1.msra.mxu0 %v613
        %615 = vmatprep.subr.mxu0 0.0
        %v616 = vand.u32 %v230, 4294901760
        %617 = vmatpush1.msra.mxu0 %v616
        %618 = vmatprep.subr.mxu0 0.0
        %v619 = vand.u32 %v231, 4294901760
        %620 = vmatpush1.msra.mxu0 %v619
        %621 = vmatprep.subr.mxu0 0.0
        %v622 = vand.u32 %v232, 4294901760
        %623 = vmatpush1.msra.mxu0 %v622
        %624 = vmatprep.subr.mxu0 0.0
        %v625 = vand.u32 %v233, 4294901760
        %626 = vmatpush1.msra.mxu0 %v625
        %627 = vmatprep.subr.mxu0 0.0
        %v628 = vand.u32 %v234, 4294901760
        %629 = vmatpush1.msra.mxu0 %v628
        %630 = vmatprep.subr.mxu0 0.0
        %v631 = vand.u32 %v235, 4294901760
        %632 = vmatpush1.msra.mxu0 %v631
        %633 = vmatprep.subr.mxu0 0.0
        %v634 = vand.u32 %v236, 4294901760
        %635 = vmatpush1.msra.mxu0 %v634
        %636 = vmatprep.subr.mxu0 0.0
        %v637 = vand.u32 %v237, 4294901760
        %638 = vmatpush1.msra.mxu0 %v637
        %639 = vmatprep.subr.mxu0 0.0
        %640 = vmatpush1.msra.mxu0 0.0
        %641 = vmatprep.subr.mxu0 0.0
        %642 = vmatpush1.msra.mxu0 0.0
        %643 = vmatprep.subr.mxu0 0.0
        %644 = vmatpush1.msra.mxu0 0.0
        %645 = vmatprep.subr.mxu0 0.0
        %646 = vmatpush1.msra.mxu0 0.0
        %647 = vmatprep.subr.mxu0 0.0
        %648 = vmatpush1.msra.mxu0 0.0
        %649 = vmatprep.subr.mxu0 0.0
        %650 = vmatpush1.msra.mxu0 0.0
        %651 = vmatprep.subr.mxu0 0.0
        %652 = vmatpush1.msra.mxu0 0.0
        %653 = vmatprep.subr.mxu0 0.0
        %654 = vmatpush1.msra.mxu0 0.0
        %655 = vmatprep.subr.mxu0 0.0
        %656 = vmatpush1.msra.mxu0 0.0
        %657 = vmatprep.subr.mxu0 0.0
        %658 = vmatpush1.msra.mxu0 0.0
        %659 = vmatprep.subr.mxu0 0.0
        %660 = vmatpush1.msra.mxu0 0.0
        %661 = vmatprep.subr.mxu0 0.0
        %662 = vmatpush1.msra.mxu0 0.0
        %663 = vmatprep.subr.mxu0 0.0
        %664 = vmatpush1.msra.mxu0 0.0
        %665 = vmatprep.subr.mxu0 0.0
        %666 = vmatpush1.msra.mxu0 0.0
        %667 = vmatprep.subr.mxu0 0.0
        %668 = vmatpush1.msra.mxu0 0.0
        %669 = vmatprep.subr.mxu0 0.0
        %670 = vmatpush1.msra.mxu0 0.0
        %671 = vmatprep.mubr.f32.mxu0 0.0
        %v672 = vand.u32 %v221, 4294901760
        %v673 = vsub.f32 %v221, %v672
        %v674 = vand.u32 %v673, 4294901760
        %675 = vmatmul.mubr.f32.gmra.mrb[0].mxu0 %v674
        %v676 = vpop.f32.mrb[0].mxu0
        %v677 = vadd.f32 %v588, %v676
        %v678 = vpop.f32.mrb[0].mxu0
        %679 = vdwg.mxu0
        %680 = vmatprep.subr.mxu0 0.0
        %v681 = vand.u32 %v222, 4294901760
        %v682 = vsub.f32 %v222, %v681
        %v683 = vand.u32 %v682, 4294901760
        %684 = vmatpush1.msra.mxu0 %v683
        %685 = vmatprep.subr.mxu0 0.0
        %v686 = vand.u32 %v223, 4294901760
        %v687 = vsub.f32 %v223, %v686
        %v688 = vand.u32 %v687, 4294901760
        %689 = vmatpush1.msra.mxu0 %v688
        %690 = vmatprep.subr.mxu0 0.0
        %v691 = vand.u32 %v224, 4294901760
        %v692 = vsub.f32 %v224, %v691
        %v693 = vand.u32 %v692, 4294901760
        %694 = vmatpush1.msra.mxu0 %v693
        %695 = vmatprep.subr.mxu0 0.0
        %v696 = vand.u32 %v225, 4294901760
        %v697 = vsub.f32 %v225, %v696
        %v698 = vand.u32 %v697, 4294901760
        %699 = vmatpush1.msra.mxu0 %v698
        %700 = vmatprep.subr.mxu0 0.0
        %v701 = vand.u32 %v226, 4294901760
        %v702 = vsub.f32 %v226, %v701
        %v703 = vand.u32 %v702, 4294901760
        %704 = vmatpush1.msra.mxu0 %v703
        %705 = vmatprep.subr.mxu0 0.0
        %v706 = vand.u32 %v227, 4294901760
        %v707 = vsub.f32 %v227, %v706
        %v708 = vand.u32 %v707, 4294901760
        %709 = vmatpush1.msra.mxu0 %v708
        %710 = vmatprep.subr.mxu0 0.0
        %v711 = vand.u32 %v228, 4294901760
        %v712 = vsub.f32 %v228, %v711
        %v713 = vand.u32 %v712, 4294901760
        %714 = vmatpush1.msra.mxu0 %v713
        %715 = vmatprep.subr.mxu0 0.0
        %v716 = vand.u32 %v229, 4294901760
        %v717 = vsub.f32 %v229, %v716
        %v718 = vand.u32 %v717, 4294901760
        %719 = vmatpush1.msra.mxu0 %v718
        %720 = vmatprep.subr.mxu0 0.0
        %v721 = vand.u32 %v230, 4294901760
        %v722 = vsub.f32 %v230, %v721
        %v723 = vand.u32 %v722, 4294901760
        %724 = vmatpush1.msra.mxu0 %v723
        %725 = vmatprep.subr.mxu0 0.0
        %v726 = vand.u32 %v231, 4294901760
        %v727 = vsub.f32 %v231, %v726
        %v728 = vand.u32 %v727, 4294901760
        %729 = vmatpush1.msra.mxu0 %v728
        %730 = vmatprep.subr.mxu0 0.0
        %v731 = vand.u32 %v232, 4294901760
        %v732 = vsub.f32 %v232, %v731
        %v733 = vand.u32 %v732, 4294901760
        %734 = vmatpush1.msra.mxu0 %v733
        %735 = vmatprep.subr.mxu0 0.0
        %v736 = vand.u32 %v233, 4294901760
        %v737 = vsub.f32 %v233, %v736
        %v738 = vand.u32 %v737, 4294901760
        %739 = vmatpush1.msra.mxu0 %v738
        %740 = vmatprep.subr.mxu0 0.0
        %v741 = vand.u32 %v234, 4294901760
        %v742 = vsub.f32 %v234, %v741
        %v743 = vand.u32 %v742, 4294901760
        %744 = vmatpush1.msra.mxu0 %v743
        %745 = vmatprep.subr.mxu0 0.0
        %v746 = vand.u32 %v235, 4294901760
        %v747 = vsub.f32 %v235, %v746
        %v748 = vand.u32 %v747, 4294901760
        %749 = vmatpush1.msra.mxu0 %v748
        %750 = vmatprep.subr.mxu0 0.0
        %v751 = vand.u32 %v236, 4294901760
        %v752 = vsub.f32 %v236, %v751
        %v753 = vand.u32 %v752, 4294901760
        %754 = vmatpush1.msra.mxu0 %v753
        %755 = vmatprep.subr.mxu0 0.0
        %v756 = vand.u32 %v237, 4294901760
        %v757 = vsub.f32 %v237, %v756
        %v758 = vand.u32 %v757, 4294901760
        %759 = vmatpush1.msra.mxu0 %v758
        %760 = vmatprep.subr.mxu0 0.0
        %761 = vmatpush1.msra.mxu0 0.0
        %762 = vmatprep.subr.mxu0 0.0
        %763 = vmatpush1.msra.mxu0 0.0
        %764 = vmatprep.subr.mxu0 0.0
        %765 = vmatpush1.msra.mxu0 0.0
        %766 = vmatprep.subr.mxu0 0.0
        %767 = vmatpush1.msra.mxu0 0.0
        %768 = vmatprep.subr.mxu0 0.0
        %769 = vmatpush1.msra.mxu0 0.0
        %770 = vmatprep.subr.mxu0 0.0
        %771 = vmatpush1.msra.mxu0 0.0
        %772 = vmatprep.subr.mxu0 0.0
        %773 = vmatpush1.msra.mxu0 0.0
        %774 = vmatprep.subr.mxu0 0.0
        %775 = vmatpush1.msra.mxu0 0.0
        %776 = vmatprep.subr.mxu0 0.0
        %777 = vmatpush1.msra.mxu0 0.0
        %778 = vmatprep.subr.mxu0 0.0
        %779 = vmatpush1.msra.mxu0 0.0
        %780 = vmatprep.subr.mxu0 0.0
        %781 = vmatpush1.msra.mxu0 0.0
        %782 = vmatprep.subr.mxu0 0.0
        %783 = vmatpush1.msra.mxu0 0.0
        %784 = vmatprep.subr.mxu0 0.0
        %785 = vmatpush1.msra.mxu0 0.0
        %786 = vmatprep.subr.mxu0 0.0
        %787 = vmatpush1.msra.mxu0 0.0
        %788 = vmatprep.subr.mxu0 0.0
        %789 = vmatpush1.msra.mxu0 0.0
        %790 = vmatprep.subr.mxu0 0.0
        %791 = vmatpush1.msra.mxu0 0.0
        %792 = vmatprep.mubr.f32.mxu0 0.0
        %v793 = vand.u32 %v221, 4294901760
        %794 = vmatmul.mubr.f32.gmra.mrb[0].mxu0 %v793
        %v795 = vpop.f32.mrb[0].mxu0
        %v796 = vadd.f32 %v677, %v795
        %v797 = vpop.f32.mrb[0].mxu0
        %798 = vdwg.mxu0
        %799 = vmatprep.subr.mxu0 0.0
        %v800 = vand.u32 %v222, 4294901760
        %801 = vmatpush1.msra.mxu0 %v800
        %802 = vmatprep.subr.mxu0 0.0
        %v803 = vand.u32 %v223, 4294901760
        %804 = vmatpush1.msra.mxu0 %v803
        %805 = vmatprep.subr.mxu0 0.0
        %v806 = vand.u32 %v224, 4294901760
        %807 = vmatpush1.msra.mxu0 %v806
        %808 = vmatprep.subr.mxu0 0.0
        %v809 = vand.u32 %v225, 4294901760
        %810 = vmatpush1.msra.mxu0 %v809
        %811 = vmatprep.subr.mxu0 0.0
        %v812 = vand.u32 %v226, 4294901760
        %813 = vmatpush1.msra.mxu0 %v812
        %814 = vmatprep.subr.mxu0 0.0
        %v815 = vand.u32 %v227, 4294901760
        %816 = vmatpush1.msra.mxu0 %v815
        %817 = vmatprep.subr.mxu0 0.0
        %v818 = vand.u32 %v228, 4294901760
        %819 = vmatpush1.msra.mxu0 %v818
        %820 = vmatprep.subr.mxu0 0.0
        %v821 = vand.u32 %v229, 4294901760
        %822 = vmatpush1.msra.mxu0 %v821
        %823 = vmatprep.subr.mxu0 0.0
        %v824 = vand.u32 %v230, 4294901760
        %825 = vmatpush1.msra.mxu0 %v824
        %826 = vmatprep.subr.mxu0 0.0
        %v827 = vand.u32 %v231, 4294901760
        %828 = vmatpush1.msra.mxu0 %v827
        %829 = vmatprep.subr.mxu0 0.0
        %v830 = vand.u32 %v232, 4294901760
        %831 = vmatpush1.msra.mxu0 %v830
        %832 = vmatprep.subr.mxu0 0.0
        %v833 = vand.u32 %v233, 4294901760
        %834 = vmatpush1.msra.mxu0 %v833
        %835 = vmatprep.subr.mxu0 0.0
        %v836 = vand.u32 %v234, 4294901760
        %837 = vmatpush1.msra.mxu0 %v836
        %838 = vmatprep.subr.mxu0 0.0
        %v839 = vand.u32 %v235, 4294901760
        %840 = vmatpush1.msra.mxu0 %v839
        %841 = vmatprep.subr.mxu0 0.0
        %v842 = vand.u32 %v236, 4294901760
        %843 = vmatpush1.msra.mxu0 %v842
        %844 = vmatprep.subr.mxu0 0.0
        %v845 = vand.u32 %v237, 4294901760
        %846 = vmatpush1.msra.mxu0 %v845
        %847 = vmatprep.subr.mxu0 0.0
        %848 = vmatpush1.msra.mxu0 0.0
        %849 = vmatprep.subr.mxu0 0.0
        %850 = vmatpush1.msra.mxu0 0.0
        %851 = vmatprep.subr.mxu0 0.0
        %852 = vmatpush1.msra.mxu0 0.0
        %853 = vmatprep.subr.mxu0 0.0
        %854 = vmatpush1.msra.mxu0 0.0
        %855 = vmatprep.subr.mxu0 0.0
        %856 = vmatpush1.msra.mxu0 0.0
        %857 = vmatprep.subr.mxu0 0.0
        %858 = vmatpush1.msra.mxu0 0.0
        %859 = vmatprep.subr.mxu0 0.0
        %860 = vmatpush1.msra.mxu0 0.0
        %861 = vmatprep.subr.mxu0 0.0
        %862 = vmatpush1.msra.mxu0 0.0
        %863 = vmatprep.subr.mxu0 0.0
        %864 = vmatpush1.msra.mxu0 0.0
        %865 = vmatprep.subr.mxu0 0.0
        %866 = vmatpush1.msra.mxu0 0.0
        %867 = vmatprep.subr.mxu0 0.0
        %868 = vmatpush1.msra.mxu0 0.0
        %869 = vmatprep.subr.mxu0 0.0
        %870 = vmatpush1.msra.mxu0 0.0
        %871 = vmatprep.subr.mxu0 0.0
        %872 = vmatpush1.msra.mxu0 0.0
        %873 = vmatprep.subr.mxu0 0.0
        %874 = vmatpush1.msra.mxu0 0.0
        %875 = vmatprep.subr.mxu0 0.0
        %876 = vmatpush1.msra.mxu0 0.0
        %877 = vmatprep.subr.mxu0 0.0
        %878 = vmatpush1.msra.mxu0 0.0
        %879 = vmatprep.mubr.f32.mxu0 0.0
        %v880 = vand.u32 %v221, 4294901760
        %881 = vmatmul.mubr.f32.gmra.mrb[0].mxu0 %v880
        %v882 = vpop.f32.mrb[0].mxu0
        %v883 = vadd.f32 %v796, %v882
        %v884 = vpop.f32.mrb[0].mxu0
        %885 = vdwg.mxu0
        %v886 = vmax.f32 %v883, 0.0
        %v887 = vld [vmem:[%s3] sm:$0xff]
        %v888 = vld [vmem:[%s3 + $0x8] sm:$0xff]
        %v889 = vld [vmem:[%s3 + $0x10] sm:$0xff]
        %v890 = vld [vmem:[%s3 + $0x18] sm:$0xff]
        %v891 = vld [vmem:[%s3 + $0x20] sm:$0xff]
        %v892 = vld [vmem:[%s3 + $0x28] sm:$0xff]
        %v893 = vld [vmem:[%s3 + $0x30] sm:$0xff]
        %v894 = vld [vmem:[%s3 + $0x38] sm:$0xff]
        %v895 = vld [vmem:[%s3 + $0x40] sm:$0xff]
        %v896 = vld [vmem:[%s3 + $0x48] sm:$0xff]
        %v897 = vld [vmem:[%s3 + $0x50] sm:$0xff]
        %v898 = vld [vmem:[%s3 + $0x58] sm:$0xff]
        %v899 = vld [vmem:[%s3 + $0x60] sm:$0xff]
        %v900 = vld [vmem:[%s3 + $0x68] sm:$0xff]
        %v901 = vld [vmem:[%s3 + $0x70] sm:$0xff]
        %v902 = vld [vmem:[%s3 + $0x78] sm:$0xff]
        %s903 = sld [smem:[#allocation2]]
        %v904 = vstv %s903
        %905 = vmatprep.subr.mxu0 0.0
        %v906 = vand.u32 %v887, 4294901760
        %907 = vmatpush1.msra.mxu0 %v906
        %908 = vmatprep.subr.mxu0 0.0
        %v909 = vand.u32 %v888, 4294901760
        %910 = vmatpush1.msra.mxu0 %v909
        %911 = vmatprep.subr.mxu0 0.0
        %v912 = vand.u32 %v889, 4294901760
        %913 = vmatpush1.msra.mxu0 %v912
        %914 = vmatprep.subr.mxu0 0.0
        %v915 = vand.u32 %v890, 4294901760
        %916 = vmatpush1.msra.mxu0 %v915
        %917 = vmatprep.subr.mxu0 0.0
        %v918 = vand.u32 %v891, 4294901760
        %919 = vmatpush1.msra.mxu0 %v918
        %920 = vmatprep.subr.mxu0 0.0
        %v921 = vand.u32 %v892, 4294901760
        %922 = vmatpush1.msra.mxu0 %v921
        %923 = vmatprep.subr.mxu0 0.0
        %v924 = vand.u32 %v893, 4294901760
        %925 = vmatpush1.msra.mxu0 %v924
        %926 = vmatprep.subr.mxu0 0.0
        %v927 = vand.u32 %v894, 4294901760
        %928 = vmatpush1.msra.mxu0 %v927
        %929 = vmatprep.subr.mxu0 0.0
        %v930 = vand.u32 %v895, 4294901760
        %931 = vmatpush1.msra.mxu0 %v930
        %932 = vmatprep.subr.mxu0 0.0
        %v933 = vand.u32 %v896, 4294901760
        %934 = vmatpush1.msra.mxu0 %v933
        %935 = vmatprep.subr.mxu0 0.0
        %v936 = vand.u32 %v897, 4294901760
        %937 = vmatpush1.msra.mxu0 %v936
        %938 = vmatprep.subr.mxu0 0.0
        %v939 = vand.u32 %v898, 4294901760
        %940 = vmatpush1.msra.mxu0 %v939
        %941 = vmatprep.subr.mxu0 0.0
        %v942 = vand.u32 %v899, 4294901760
        %943 = vmatpush1.msra.mxu0 %v942
        %944 = vmatprep.subr.mxu0 0.0
        %v945 = vand.u32 %v900, 4294901760
        %946 = vmatpush1.msra.mxu0 %v945
        %947 = vmatprep.subr.mxu0 0.0
        %v948 = vand.u32 %v901, 4294901760
        %949 = vmatpush1.msra.mxu0 %v948
        %950 = vmatprep.subr.mxu0 0.0
        %v951 = vand.u32 %v902, 4294901760
        %952 = vmatpush1.msra.mxu0 %v951
        %953 = vmatprep.subr.mxu0 0.0
        %954 = vmatpush1.msra.mxu0 0.0
        %955 = vmatprep.subr.mxu0 0.0
        %956 = vmatpush1.msra.mxu0 0.0
        %957 = vmatprep.subr.mxu0 0.0
        %958 = vmatpush1.msra.mxu0 0.0
        %959 = vmatprep.subr.mxu0 0.0
        %960 = vmatpush1.msra.mxu0 0.0
        %961 = vmatprep.subr.mxu0 0.0
        %962 = vmatpush1.msra.mxu0 0.0
        %963 = vmatprep.subr.mxu0 0.0
        %964 = vmatpush1.msra.mxu0 0.0
        %965 = vmatprep.subr.mxu0 0.0
        %966 = vmatpush1.msra.mxu0 0.0
        %967 = vmatprep.subr.mxu0 0.0
        %968 = vmatpush1.msra.mxu0 0.0
        %969 = vmatprep.subr.mxu0 0.0
        %970 = vmatpush1.msra.mxu0 0.0
        %971 = vmatprep.subr.mxu0 0.0
        %972 = vmatpush1.msra.mxu0 0.0
        %973 = vmatprep.subr.mxu0 0.0
        %974 = vmatpush1.msra.mxu0 0.0
        %975 = vmatprep.subr.mxu0 0.0
        %976 = vmatpush1.msra.mxu0 0.0
        %977 = vmatprep.subr.mxu0 0.0
        %978 = vmatpush1.msra.mxu0 0.0
        %979 = vmatprep.subr.mxu0 0.0
        %980 = vmatpush1.msra.mxu0 0.0
        %981 = vmatprep.subr.mxu0 0.0
        %982 = vmatpush1.msra.mxu0 0.0
        %983 = vmatprep.subr.mxu0 0.0
        %984 = vmatpush1.msra.mxu0 0.0
        %985 = vmatprep.mubr.f32.mxu0 0.0
        %v986 = vand.u32 %v886, 4294901760
        %v987 = vsub.f32 %v886, %v986
        %v988 = vand.u32 %v987, 4294901760
        %v989 = vsub.f32 %v987, %v988
        %v990 = vand.u32 %v989, 4294901760
        %991 = vmatmul.mubr.f32.gmra.mrb[0].mxu0 %v990
        %v992 = vpop.f32.mrb[0].mxu0
        %v993 = vadd.f32 %v904, %v992
        %v994 = vpop.f32.mrb[0].mxu0
        %995 = vdwg.mxu0
        %996 = vmatprep.subr.mxu0 0.0
        %v997 = vand.u32 %v887, 4294901760
        %v998 = vsub.f32 %v887, %v997
        %v999 = vand.u32 %v998, 4294901760
        %v1000 = vsub.f32 %v998, %v999
        %v1001 = vand.u32 %v1000, 4294901760
        %1002 = vmatpush1.msra.mxu0 %v1001
        %1003 = vmatprep.subr.mxu0 0.0
        %v1004 = vand.u32 %v888, 4294901760
        %v1005 = vsub.f32 %v888, %v1004
        %v1006 = vand.u32 %v1005, 4294901760
        %v1007 = vsub.f32 %v1005, %v1006
        %v1008 = vand.u32 %v1007, 4294901760
        %1009 = vmatpush1.msra.mxu0 %v1008
        %1010 = vmatprep.subr.mxu0 0.0
        %v1011 = vand.u32 %v889, 4294901760
        %v1012 = vsub.f32 %v889, %v1011
        %v1013 = vand.u32 %v1012, 4294901760
        %v1014 = vsub.f32 %v1012, %v1013
        %v1015 = vand.u32 %v1014, 4294901760
        %1016 = vmatpush1.msra.mxu0 %v1015
        %1017 = vmatprep.subr.mxu0 0.0
        %v1018 = vand.u32 %v890, 4294901760
        %v1019 = vsub.f32 %v890, %v1018
        %v1020 = vand.u32 %v1019, 4294901760
        %v1021 = vsub.f32 %v1019, %v1020
        %v1022 = vand.u32 %v1021, 4294901760
        %1023 = vmatpush1.msra.mxu0 %v1022
        %1024 = vmatprep.subr.mxu0 0.0
        %v1025 = vand.u32 %v891, 4294901760
        %v1026 = vsub.f32 %v891, %v1025
        %v1027 = vand.u32 %v1026, 4294901760
        %v1028 = vsub.f32 %v1026, %v1027
        %v1029 = vand.u32 %v1028, 4294901760
        %1030 = vmatpush1.msra.mxu0 %v1029
        %1031 = vmatprep.subr.mxu0 0.0
        %v1032 = vand.u32 %v892, 4294901760
        %v1033 = vsub.f32 %v892, %v1032
        %v1034 = vand.u32 %v1033, 4294901760
        %v1035 = vsub.f32 %v1033, %v1034
        %v1036 = vand.u32 %v1035, 4294901760
        %1037 = vmatpush1.msra.mxu0 %v1036
        %1038 = vmatprep.subr.mxu0 0.0
        %v1039 = vand.u32 %v893, 4294901760
        %v1040 = vsub.f32 %v893, %v1039
        %v1041 = vand.u32 %v1040, 4294901760
        %v1042 = vsub.f32 %v1040, %v1041
        %v1043 = vand.u32 %v1042, 4294901760
        %1044 = vmatpush1.msra.mxu0 %v1043
        %1045 = vmatprep.subr.mxu0 0.0
        %v1046 = vand.u32 %v894, 4294901760
        %v1047 = vsub.f32 %v894, %v1046
        %v1048 = vand.u32 %v1047, 4294901760
        %v1049 = vsub.f32 %v1047, %v1048
        %v1050 = vand.u32 %v1049, 4294901760
        %1051 = vmatpush1.msra.mxu0 %v1050
        %1052 = vmatprep.subr.mxu0 0.0
        %v1053 = vand.u32 %v895, 4294901760
        %v1054 = vsub.f32 %v895, %v1053
        %v1055 = vand.u32 %v1054, 4294901760
        %v1056 = vsub.f32 %v1054, %v1055
        %v1057 = vand.u32 %v1056, 4294901760
        %1058 = vmatpush1.msra.mxu0 %v1057
        %1059 = vmatprep.subr.mxu0 0.0
        %v1060 = vand.u32 %v896, 4294901760
        %v1061 = vsub.f32 %v896, %v1060
        %v1062 = vand.u32 %v1061, 4294901760
        %v1063 = vsub.f32 %v1061, %v1062
        %v1064 = vand.u32 %v1063, 4294901760
        %1065 = vmatpush1.msra.mxu0 %v1064
        %1066 = vmatprep.subr.mxu0 0.0
        %v1067 = vand.u32 %v897, 4294901760
        %v1068 = vsub.f32 %v897, %v1067
        %v1069 = vand.u32 %v1068, 4294901760
        %v1070 = vsub.f32 %v1068, %v1069
        %v1071 = vand.u32 %v1070, 4294901760
        %1072 = vmatpush1.msra.mxu0 %v1071
        %1073 = vmatprep.subr.mxu0 0.0
        %v1074 = vand.u32 %v898, 4294901760
        %v1075 = vsub.f32 %v898, %v1074
        %v1076 = vand.u32 %v1075, 4294901760
        %v1077 = vsub.f32 %v1075, %v1076
        %v1078 = vand.u32 %v1077, 4294901760
        %1079 = vmatpush1.msra.mxu0 %v1078
        %1080 = vmatprep.subr.mxu0 0.0
        %v1081 = vand.u32 %v899, 4294901760
        %v1082 = vsub.f32 %v899, %v1081
        %v1083 = vand.u32 %v1082, 4294901760
        %v1084 = vsub.f32 %v1082, %v1083
        %v1085 = vand.u32 %v1084, 4294901760
        %1086 = vmatpush1.msra.mxu0 %v1085
        %1087 = vmatprep.subr.mxu0 0.0
        %v1088 = vand.u32 %v900, 4294901760
        %v1089 = vsub.f32 %v900, %v1088
        %v1090 = vand.u32 %v1089, 4294901760
        %v1091 = vsub.f32 %v1089, %v1090
        %v1092 = vand.u32 %v1091, 4294901760
        %1093 = vmatpush1.msra.mxu0 %v1092
        %1094 = vmatprep.subr.mxu0 0.0
        %v1095 = vand.u32 %v901, 4294901760
        %v1096 = vsub.f32 %v901, %v1095
        %v1097 = vand.u32 %v1096, 4294901760
        %v1098 = vsub.f32 %v1096, %v1097
        %v1099 = vand.u32 %v1098, 4294901760
        %1100 = vmatpush1.msra.mxu0 %v1099
        %1101 = vmatprep.subr.mxu0 0.0
        %v1102 = vand.u32 %v902, 4294901760
        %v1103 = vsub.f32 %v902, %v1102
        %v1104 = vand.u32 %v1103, 4294901760
        %v1105 = vsub.f32 %v1103, %v1104
        %v1106 = vand.u32 %v1105, 4294901760
        %1107 = vmatpush1.msra.mxu0 %v1106
        %1108 = vmatprep.subr.mxu0 0.0
        %1109 = vmatpush1.msra.mxu0 0.0
        %1110 = vmatprep.subr.mxu0 0.0
        %1111 = vmatpush1.msra.mxu0 0.0
        %1112 = vmatprep.subr.mxu0 0.0
        %1113 = vmatpush1.msra.mxu0 0.0
        %1114 = vmatprep.subr.mxu0 0.0
        %1115 = vmatpush1.msra.mxu0 0.0
        %1116 = vmatprep.subr.mxu0 0.0
        %1117 = vmatpush1.msra.mxu0 0.0
        %1118 = vmatprep.subr.mxu0 0.0
        %1119 = vmatpush1.msra.mxu0 0.0
        %1120 = vmatprep.subr.mxu0 0.0
        %1121 = vmatpush1.msra.mxu0 0.0
        %1122 = vmatprep.subr.mxu0 0.0
        %1123 = vmatpush1.msra.mxu0 0.0
        %1124 = vmatprep.subr.mxu0 0.0
        %1125 = vmatpush1.msra.mxu0 0.0
        %1126 = vmatprep.subr.mxu0 0.0
        %1127 = vmatpush1.msra.mxu0 0.0
        %1128 = vmatprep.subr.mxu0 0.0
        %1129 = vmatpush1.msra.mxu0 0.0
        %1130 = vmatprep.subr.mxu0 0.0
        %1131 = vmatpush1.msra.mxu0 0.0
        %1132 = vmatprep.subr.mxu0 0.0
        %1133 = vmatpush1.msra.mxu0 0.0
        %1134 = vmatprep.subr.mxu0 0.0
        %1135 = vmatpush1.msra.mxu0 0.0
        %1136 = vmatprep.subr.mxu0 0.0
        %1137 = vmatpush1.msra.mxu0 0.0
        %1138 = vmatprep.subr.mxu0 0.0
        %1139 = vmatpush1.msra.mxu0 0.0
        %1140 = vmatprep.mubr.f32.mxu0 0.0
        %v1141 = vand.u32 %v886, 4294901760
        %1142 = vmatmul.mubr.f32.gmra.mrb[0].mxu0 %v1141
        %v1143 = vpop.f32.mrb[0].mxu0
        %v1144 = vadd.f32 %v993, %v1143
        %v1145 = vpop.f32.mrb[0].mxu0
        %1146 = vdwg.mxu0
        %1147 = vmatprep.subr.mxu0 0.0
        %v1148 = vand.u32 %v887, 4294901760
        %v1149 = vsub.f32 %v887, %v1148
        %1150 = vmatpush1.msra.mxu0 %v1149
        %1151 = vmatprep.subr.mxu0 0.0
        %v1152 = vand.u32 %v888, 4294901760
        %v1153 = vsub.f32 %v888, %v1152
        %1154 = vmatpush1.msra.mxu0 %v1153
        %1155 = vmatprep.subr.mxu0 0.0
        %v1156 = vand.u32 %v889, 4294901760
        %v1157 = vsub.f32 %v889, %v1156
        %1158 = vmatpush1.msra.mxu0 %v1157
        %1159 = vmatprep.subr.mxu0 0.0
        %v1160 = vand.u32 %v890, 4294901760
        %v1161 = vsub.f32 %v890, %v1160
        %1162 = vmatpush1.msra.mxu0 %v1161
        %1163 = vmatprep.subr.mxu0 0.0
        %v1164 = vand.u32 %v891, 4294901760
        %v1165 = vsub.f32 %v891, %v1164
        %1166 = vmatpush1.msra.mxu0 %v1165
        %1167 = vmatprep.subr.mxu0 0.0
        %v1168 = vand.u32 %v892, 4294901760
        %v1169 = vsub.f32 %v892, %v1168
        %1170 = vmatpush1.msra.mxu0 %v1169
        %1171 = vmatprep.subr.mxu0 0.0
        %v1172 = vand.u32 %v893, 4294901760
        %v1173 = vsub.f32 %v893, %v1172
        %1174 = vmatpush1.msra.mxu0 %v1173
        %1175 = vmatprep.subr.mxu0 0.0
        %v1176 = vand.u32 %v894, 4294901760
        %v1177 = vsub.f32 %v894, %v1176
        %1178 = vmatpush1.msra.mxu0 %v1177
        %1179 = vmatprep.subr.mxu0 0.0
        %v1180 = vand.u32 %v895, 4294901760
        %v1181 = vsub.f32 %v895, %v1180
        %1182 = vmatpush1.msra.mxu0 %v1181
        %1183 = vmatprep.subr.mxu0 0.0
        %v1184 = vand.u32 %v896, 4294901760
        %v1185 = vsub.f32 %v896, %v1184
        %1186 = vmatpush1.msra.mxu0 %v1185
        %1187 = vmatprep.subr.mxu0 0.0
        %v1188 = vand.u32 %v897, 4294901760
        %v1189 = vsub.f32 %v897, %v1188
        %1190 = vmatpush1.msra.mxu0 %v1189
        %1191 = vmatprep.subr.mxu0 0.0
        %v1192 = vand.u32 %v898, 4294901760
        %v1193 = vsub.f32 %v898, %v1192
        %1194 = vmatpush1.msra.mxu0 %v1193
        %1195 = vmatprep.subr.mxu0 0.0
        %v1196 = vand.u32 %v899, 4294901760
        %v1197 = vsub.f32 %v899, %v1196
        %1198 = vmatpush1.msra.mxu0 %v1197
        %1199 = vmatprep.subr.mxu0 0.0
        %v1200 = vand.u32 %v900, 4294901760
        %v1201 = vsub.f32 %v900, %v1200
        %1202 = vmatpush1.msra.mxu0 %v1201
        %1203 = vmatprep.subr.mxu0 0.0
        %v1204 = vand.u32 %v901, 4294901760
        %v1205 = vsub.f32 %v901, %v1204
        %1206 = vmatpush1.msra.mxu0 %v1205
        %1207 = vmatprep.subr.mxu0 0.0
        %v1208 = vand.u32 %v902, 4294901760
        %v1209 = vsub.f32 %v902, %v1208
        %1210 = vmatpush1.msra.mxu0 %v1209
        %1211 = vmatprep.subr.mxu0 0.0
        %1212 = vmatpush1.msra.mxu0 0.0
        %1213 = vmatprep.subr.mxu0 0.0
        %1214 = vmatpush1.msra.mxu0 0.0
        %1215 = vmatprep.subr.mxu0 0.0
        %1216 = vmatpush1.msra.mxu0 0.0
        %1217 = vmatprep.subr.mxu0 0.0
        %1218 = vmatpush1.msra.mxu0 0.0
        %1219 = vmatprep.subr.mxu0 0.0
        %1220 = vmatpush1.msra.mxu0 0.0
        %1221 = vmatprep.subr.mxu0 0.0
        %1222 = vmatpush1.msra.mxu0 0.0
        %1223 = vmatprep.subr.mxu0 0.0
        %1224 = vmatpush1.msra.mxu0 0.0
        %1225 = vmatprep.subr.mxu0 0.0
        %1226 = vmatpush1.msra.mxu0 0.0
        %1227 = vmatprep.subr.mxu0 0.0
        %1228 = vmatpush1.msra.mxu0 0.0
        %1229 = vmatprep.subr.mxu0 0.0
        %1230 = vmatpush1.msra.mxu0 0.0
        %1231 = vmatprep.subr.mxu0 0.0
        %1232 = vmatpush1.msra.mxu0 0.0
        %1233 = vmatprep.subr.mxu0 0.0
        %1234 = vmatpush1.msra.mxu0 0.0
        %1235 = vmatprep.subr.mxu0 0.0
        %1236 = vmatpush1.msra.mxu0 0.0
        %1237 = vmatprep.subr.mxu0 0.0
        %1238 = vmatpush1.msra.mxu0 0.0
        %1239 = vmatprep.subr.mxu0 0.0
        %1240 = vmatpush1.msra.mxu0 0.0
        %1241 = vmatprep.subr.mxu0 0.0
        %1242 = vmatpush1.msra.mxu0 0.0
        %1243 = vmatprep.mubr.f32.mxu0 0.0
        %v1244 = vand.u32 %v886, 4294901760
        %v1245 = vsub.f32 %v886, %v1244
        %1246 = vmatmul.mubr.f32.gmra.mrb[0].mxu0 %v1245
        %v1247 = vpop.f32.mrb[0].mxu0
        %v1248 = vadd.f32 %v1144, %v1247
        %v1249 = vpop.f32.mrb[0].mxu0
        %1250 = vdwg.mxu0
        %1251 = vmatprep.subr.mxu0 0.0
        %v1252 = vand.u32 %v887, 4294901760
        %1253 = vmatpush1.msra.mxu0 %v1252
        %1254 = vmatprep.subr.mxu0 0.0
        %v1255 = vand.u32 %v888, 4294901760
        %1256 = vmatpush1.msra.mxu0 %v1255
        %1257 = vmatprep.subr.mxu0 0.0
        %v1258 = vand.u32 %v889, 4294901760
        %1259 = vmatpush1.msra.mxu0 %v1258
        %1260 = vmatprep.subr.mxu0 0.0
        %v1261 = vand.u32 %v890, 4294901760
        %1262 = vmatpush1.msra.mxu0 %v1261
        %1263 = vmatprep.subr.mxu0 0.0
        %v1264 = vand.u32 %v891, 4294901760
        %1265 = vmatpush1.msra.mxu0 %v1264
        %1266 = vmatprep.subr.mxu0 0.0
        %v1267 = vand.u32 %v892, 4294901760
        %1268 = vmatpush1.msra.mxu0 %v1267
        %1269 = vmatprep.subr.mxu0 0.0
        %v1270 = vand.u32 %v893, 4294901760
        %1271 = vmatpush1.msra.mxu0 %v1270
        %1272 = vmatprep.subr.mxu0 0.0
        %v1273 = vand.u32 %v894, 4294901760
        %1274 = vmatpush1.msra.mxu0 %v1273
        %1275 = vmatprep.subr.mxu0 0.0
        %v1276 = vand.u32 %v895, 4294901760
        %1277 = vmatpush1.msra.mxu0 %v1276
        %1278 = vmatprep.subr.mxu0 0.0
        %v1279 = vand.u32 %v896, 4294901760
        %1280 = vmatpush1.msra.mxu0 %v1279
        %1281 = vmatprep.subr.mxu0 0.0
        %v1282 = vand.u32 %v897, 4294901760
        %1283 = vmatpush1.msra.mxu0 %v1282
        %1284 = vmatprep.subr.mxu0 0.0
        %v1285 = vand.u32 %v898, 4294901760
        %1286 = vmatpush1.msra.mxu0 %v1285
        %1287 = vmatprep.subr.mxu0 0.0
        %v1288 = vand.u32 %v899, 4294901760
        %1289 = vmatpush1.msra.mxu0 %v1288
        %1290 = vmatprep.subr.mxu0 0.0
        %v1291 = vand.u32 %v900, 4294901760
        %1292 = vmatpush1.msra.mxu0 %v1291
        %1293 = vmatprep.subr.mxu0 0.0
        %v1294 = vand.u32 %v901, 4294901760
        %1295 = vmatpush1.msra.mxu0 %v1294
        %1296 = vmatprep.subr.mxu0 0.0
        %v1297 = vand.u32 %v902, 4294901760
        %1298 = vmatpush1.msra.mxu0 %v1297
        %1299 = vmatprep.subr.mxu0 0.0
        %1300 = vmatpush1.msra.mxu0 0.0
        %1301 = vmatprep.subr.mxu0 0.0
        %1302 = vmatpush1.msra.mxu0 0.0
        %1303 = vmatprep.subr.mxu0 0.0
        %1304 = vmatpush1.msra.mxu0 0.0
        %1305 = vmatprep.subr.mxu0 0.0
        %1306 = vmatpush1.msra.mxu0 0.0
        %1307 = vmatprep.subr.mxu0 0.0
        %1308 = vmatpush1.msra.mxu0 0.0
        %1309 = vmatprep.subr.mxu0 0.0
        %1310 = vmatpush1.msra.mxu0 0.0
        %1311 = vmatprep.subr.mxu0 0.0
        %1312 = vmatpush1.msra.mxu0 0.0
        %1313 = vmatprep.subr.mxu0 0.0
        %1314 = vmatpush1.msra.mxu0 0.0
        %1315 = vmatprep.subr.mxu0 0.0
        %1316 = vmatpush1.msra.mxu0 0.0
        %1317 = vmatprep.subr.mxu0 0.0
        %1318 = vmatpush1.msra.mxu0 0.0
        %1319 = vmatprep.subr.mxu0 0.0
        %1320 = vmatpush1.msra.mxu0 0.0
        %1321 = vmatprep.subr.mxu0 0.0
        %1322 = vmatpush1.msra.mxu0 0.0
        %1323 = vmatprep.subr.mxu0 0.0
        %1324 = vmatpush1.msra.mxu0 0.0
        %1325 = vmatprep.subr.mxu0 0.0
        %1326 = vmatpush1.msra.mxu0 0.0
        %1327 = vmatprep.subr.mxu0 0.0
        %1328 = vmatpush1.msra.mxu0 0.0
        %1329 = vmatprep.subr.mxu0 0.0
        %1330 = vmatpush1.msra.mxu0 0.0
        %1331 = vmatprep.mubr.f32.mxu0 0.0
        %v1332 = vand.u32 %v886, 4294901760
        %v1333 = vsub.f32 %v886, %v1332
        %v1334 = vand.u32 %v1333, 4294901760
        %1335 = vmatmul.mubr.f32.gmra.mrb[0].mxu0 %v1334
        %v1336 = vpop.f32.mrb[0].mxu0
        %v1337 = vadd.f32 %v1248, %v1336
        %v1338 = vpop.f32.mrb[0].mxu0
        %1339 = vdwg.mxu0
        %1340 = vmatprep.subr.mxu0 0.0
        %v1341 = vand.u32 %v887, 4294901760
        %v1342 = vsub.f32 %v887, %v1341
        %v1343 = vand.u32 %v1342, 4294901760
        %1344 = vmatpush1.msra.mxu0 %v1343
        %1345 = vmatprep.subr.mxu0 0.0
        %v1346 = vand.u32 %v888, 4294901760
        %v1347 = vsub.f32 %v888, %v1346
        %v1348 = vand.u32 %v1347, 4294901760
        %1349 = vmatpush1.msra.mxu0 %v1348
        %1350 = vmatprep.subr.mxu0 0.0
        %v1351 = vand.u32 %v889, 4294901760
        %v1352 = vsub.f32 %v889, %v1351
        %v1353 = vand.u32 %v1352, 4294901760
        %1354 = vmatpush1.msra.mxu0 %v1353
        %1355 = vmatprep.subr.mxu0 0.0
        %v1356 = vand.u32 %v890, 4294901760
        %v1357 = vsub.f32 %v890, %v1356
        %v1358 = vand.u32 %v1357, 4294901760
        %1359 = vmatpush1.msra.mxu0 %v1358
        %1360 = vmatprep.subr.mxu0 0.0
        %v1361 = vand.u32 %v891, 4294901760
        %v1362 = vsub.f32 %v891, %v1361
        %v1363 = vand.u32 %v1362, 4294901760
        %1364 = vmatpush1.msra.mxu0 %v1363
        %1365 = vmatprep.subr.mxu0 0.0
        %v1366 = vand.u32 %v892, 4294901760
        %v1367 = vsub.f32 %v892, %v1366
        %v1368 = vand.u32 %v1367, 4294901760
        %1369 = vmatpush1.msra.mxu0 %v1368
        %1370 = vmatprep.subr.mxu0 0.0
        %v1371 = vand.u32 %v893, 4294901760
        %v1372 = vsub.f32 %v893, %v1371
        %v1373 = vand.u32 %v1372, 4294901760
        %1374 = vmatpush1.msra.mxu0 %v1373
        %1375 = vmatprep.subr.mxu0 0.0
        %v1376 = vand.u32 %v894, 4294901760
        %v1377 = vsub.f32 %v894, %v1376
        %v1378 = vand.u32 %v1377, 4294901760
        %1379 = vmatpush1.msra.mxu0 %v1378
        %1380 = vmatprep.subr.mxu0 0.0
        %v1381 = vand.u32 %v895, 4294901760
        %v1382 = vsub.f32 %v895, %v1381
        %v1383 = vand.u32 %v1382, 4294901760
        %1384 = vmatpush1.msra.mxu0 %v1383
        %1385 = vmatprep.subr.mxu0 0.0
        %v1386 = vand.u32 %v896, 4294901760
        %v1387 = vsub.f32 %v896, %v1386
        %v1388 = vand.u32 %v1387, 4294901760
        %1389 = vmatpush1.msra.mxu0 %v1388
        %1390 = vmatprep.subr.mxu0 0.0
        %v1391 = vand.u32 %v897, 4294901760
        %v1392 = vsub.f32 %v897, %v1391
        %v1393 = vand.u32 %v1392, 4294901760
        %1394 = vmatpush1.msra.mxu0 %v1393
        %1395 = vmatprep.subr.mxu0 0.0
        %v1396 = vand.u32 %v898, 4294901760
        %v1397 = vsub.f32 %v898, %v1396
        %v1398 = vand.u32 %v1397, 4294901760
        %1399 = vmatpush1.msra.mxu0 %v1398
        %1400 = vmatprep.subr.mxu0 0.0
        %v1401 = vand.u32 %v899, 4294901760
        %v1402 = vsub.f32 %v899, %v1401
        %v1403 = vand.u32 %v1402, 4294901760
        %1404 = vmatpush1.msra.mxu0 %v1403
        %1405 = vmatprep.subr.mxu0 0.0
        %v1406 = vand.u32 %v900, 4294901760
        %v1407 = vsub.f32 %v900, %v1406
        %v1408 = vand.u32 %v1407, 4294901760
        %1409 = vmatpush1.msra.mxu0 %v1408
        %1410 = vmatprep.subr.mxu0 0.0
        %v1411 = vand.u32 %v901, 4294901760
        %v1412 = vsub.f32 %v901, %v1411
        %v1413 = vand.u32 %v1412, 4294901760
        %1414 = vmatpush1.msra.mxu0 %v1413
        %1415 = vmatprep.subr.mxu0 0.0
        %v1416 = vand.u32 %v902, 4294901760
        %v1417 = vsub.f32 %v902, %v1416
        %v1418 = vand.u32 %v1417, 4294901760
        %1419 = vmatpush1.msra.mxu0 %v1418
        %1420 = vmatprep.subr.mxu0 0.0
        %1421 = vmatpush1.msra.mxu0 0.0
        %1422 = vmatprep.subr.mxu0 0.0
        %1423 = vmatpush1.msra.mxu0 0.0
        %1424 = vmatprep.subr.mxu0 0.0
        %1425 = vmatpush1.msra.mxu0 0.0
        %1426 = vmatprep.subr.mxu0 0.0
        %1427 = vmatpush1.msra.mxu0 0.0
        %1428 = vmatprep.subr.mxu0 0.0
        %1429 = vmatpush1.msra.mxu0 0.0
        %1430 = vmatprep.subr.mxu0 0.0
        %1431 = vmatpush1.msra.mxu0 0.0
        %1432 = vmatprep.subr.mxu0 0.0
        %1433 = vmatpush1.msra.mxu0 0.0
        %1434 = vmatprep.subr.mxu0 0.0
        %1435 = vmatpush1.msra.mxu0 0.0
        %1436 = vmatprep.subr.mxu0 0.0
        %1437 = vmatpush1.msra.mxu0 0.0
        %1438 = vmatprep.subr.mxu0 0.0
        %1439 = vmatpush1.msra.mxu0 0.0
        %1440 = vmatprep.subr.mxu0 0.0
        %1441 = vmatpush1.msra.mxu0 0.0
        %1442 = vmatprep.subr.mxu0 0.0
        %1443 = vmatpush1.msra.mxu0 0.0
        %1444 = vmatprep.subr.mxu0 0.0
        %1445 = vmatpush1.msra.mxu0 0.0
        %1446 = vmatprep.subr.mxu0 0.0
        %1447 = vmatpush1.msra.mxu0 0.0
        %1448 = vmatprep.subr.mxu0 0.0
        %1449 = vmatpush1.msra.mxu0 0.0
        %1450 = vmatprep.subr.mxu0 0.0
        %1451 = vmatpush1.msra.mxu0 0.0
        %1452 = vmatprep.mubr.f32.mxu0 0.0
        %v1453 = vand.u32 %v886, 4294901760
        %1454 = vmatmul.mubr.f32.gmra.mrb[0].mxu0 %v1453
        %v1455 = vpop.f32.mrb[0].mxu0
        %v1456 = vadd.f32 %v1337, %v1455
        %v1457 = vpop.f32.mrb[0].mxu0
        %1458 = vdwg.mxu0
        %1459 = vmatprep.subr.mxu0 0.0
        %v1460 = vand.u32 %v887, 4294901760
        %1461 = vmatpush1.msra.mxu0 %v1460
        %1462 = vmatprep.subr.mxu0 0.0
        %v1463 = vand.u32 %v888, 4294901760
        %1464 = vmatpush1.msra.mxu0 %v1463
        %1465 = vmatprep.subr.mxu0 0.0
        %v1466 = vand.u32 %v889, 4294901760
        %1467 = vmatpush1.msra.mxu0 %v1466
        %1468 = vmatprep.subr.mxu0 0.0
        %v1469 = vand.u32 %v890, 4294901760
        %1470 = vmatpush1.msra.mxu0 %v1469
        %1471 = vmatprep.subr.mxu0 0.0
        %v1472 = vand.u32 %v891, 4294901760
        %1473 = vmatpush1.msra.mxu0 %v1472
        %1474 = vmatprep.subr.mxu0 0.0
        %v1475 = vand.u32 %v892, 4294901760
        %1476 = vmatpush1.msra.mxu0 %v1475
        %1477 = vmatprep.subr.mxu0 0.0
        %v1478 = vand.u32 %v893, 4294901760
        %1479 = vmatpush1.msra.mxu0 %v1478
        %1480 = vmatprep.subr.mxu0 0.0
        %v1481 = vand.u32 %v894, 4294901760
        %1482 = vmatpush1.msra.mxu0 %v1481
        %1483 = vmatprep.subr.mxu0 0.0
        %v1484 = vand.u32 %v895, 4294901760
        %1485 = vmatpush1.msra.mxu0 %v1484
        %1486 = vmatprep.subr.mxu0 0.0
        %v1487 = vand.u32 %v896, 4294901760
        %1488 = vmatpush1.msra.mxu0 %v1487
        %1489 = vmatprep.subr.mxu0 0.0
        %v1490 = vand.u32 %v897, 4294901760
        %1491 = vmatpush1.msra.mxu0 %v1490
        %1492 = vmatprep.subr.mxu0 0.0
        %v1493 = vand.u32 %v898, 4294901760
        %1494 = vmatpush1.msra.mxu0 %v1493
        %1495 = vmatprep.subr.mxu0 0.0
        %v1496 = vand.u32 %v899, 4294901760
        %1497 = vmatpush1.msra.mxu0 %v1496
        %1498 = vmatprep.subr.mxu0 0.0
        %v1499 = vand.u32 %v900, 4294901760
        %1500 = vmatpush1.msra.mxu0 %v1499
        %1501 = vmatprep.subr.mxu0 0.0
        %v1502 = vand.u32 %v901, 4294901760
        %1503 = vmatpush1.msra.mxu0 %v1502
        %1504 = vmatprep.subr.mxu0 0.0
        %v1505 = vand.u32 %v902, 4294901760
        %1506 = vmatpush1.msra.mxu0 %v1505
        %1507 = vmatprep.subr.mxu0 0.0
        %1508 = vmatpush1.msra.mxu0 0.0
        %1509 = vmatprep.subr.mxu0 0.0
        %1510 = vmatpush1.msra.mxu0 0.0
        %1511 = vmatprep.subr.mxu0 0.0
        %1512 = vmatpush1.msra.mxu0 0.0
        %1513 = vmatprep.subr.mxu0 0.0
        %1514 = vmatpush1.msra.mxu0 0.0
        %1515 = vmatprep.subr.mxu0 0.0
        %1516 = vmatpush1.msra.mxu0 0.0
        %1517 = vmatprep.subr.mxu0 0.0
        %1518 = vmatpush1.msra.mxu0 0.0
        %1519 = vmatprep.subr.mxu0 0.0
        %1520 = vmatpush1.msra.mxu0 0.0
        %1521 = vmatprep.subr.mxu0 0.0
        %1522 = vmatpush1.msra.mxu0 0.0
        %1523 = vmatprep.subr.mxu0 0.0
        %1524 = vmatpush1.msra.mxu0 0.0
        %1525 = vmatprep.subr.mxu0 0.0
        %1526 = vmatpush1.msra.mxu0 0.0
        %1527 = vmatprep.subr.mxu0 0.0
        %1528 = vmatpush1.msra.mxu0 0.0
        %1529 = vmatprep.subr.mxu0 0.0
        %1530 = vmatpush1.msra.mxu0 0.0
        %1531 = vmatprep.subr.mxu0 0.0
        %1532 = vmatpush1.msra.mxu0 0.0
        %1533 = vmatprep.subr.mxu0 0.0
        %1534 = vmatpush1.msra.mxu0 0.0
        %1535 = vmatprep.subr.mxu0 0.0
        %1536 = vmatpush1.msra.mxu0 0.0
        %1537 = vmatprep.subr.mxu0 0.0
        %1538 = vmatpush1.msra.mxu0 0.0
        %1539 = vmatprep.mubr.f32.mxu0 0.0
        %v1540 = vand.u32 %v886, 4294901760
        %1541 = vmatmul.mubr.f32.gmra.mrb[0].mxu0 %v1540
        %v1542 = vpop.f32.mrb[0].mxu0
        %v1543 = vadd.f32 %v1456, %v1542
        %v1544 = vpop.f32.mrb[0].mxu0
        %1545 = vdwg.mxu0
        %v1546 = vsub.f32 0.0, %v1543
        %v1547 = vmul.f32 %v1546, 1.442695
        %v1548 = vpow.pop %v1547
        %v1549 = vadd.f32 %v1548, 1.0
        %v1550 = vrcp.pop %v1549
        %v1551 = vmul.f32 1.0, %v1550
        %vm1552 = vcmask 261120
        %1553 = vst.msk [vmem:[%s216] sm:$0xff] %vm1552, %v1551
        %s1554 = sand.u32 %s138, 1
        %s1555 = scalar_lea.sflag [#allocation4], %s1554
        %s1556 = sand.u32 %s138, 1
        %s1557 = smul.addr %s1556, 8
        %s1558 = scalar_lea.vmem [#allocation3], %s1557
        // Predicated region
        $region41: #{tpu_custom_call.1} parent=39 // pred_check
          %p1559 = pneg %p148
        $region42: #{tpu_custom_call.1} parent=39 // pred_check_branch
          %1561 = sbr.rel (%p1559) target = $region44
        $region43: #{tpu_custom_call.1} parent=39 // pred_region
          %s1563 = ssub.s32 128, 128
          %1564 = vsyncadd %s1555, %s1563
          %s1565 = smul.addr %s20, 128
          %s1566 = scalar_lea.hbm %s5, %s1565
          %s1568 = sshll.u32 %s1558, 4
          %s1569 = int_to_ptr.vmem [resolvable:$true] %s1568
          %1571 = dma.vmem_to_hbm [thread:$0]  %s1569, 128, %s1566, %s1555
        $region44: #{tpu_custom_call.1} parent=39 // pred_fallthru
          _
      $region40: #{tpu_custom_call.1} parent=5 // pred_fallthru
        _
      %p1572 = scmp.le.s32.totalorder 2, %s15
      // Predicated region
      $region45: #{tpu_custom_call.1} parent=5 // pred_check
        %p1573 = pneg %p1572
      $region46: #{tpu_custom_call.1} parent=5 // pred_check_branch
        %1575 = sbr.rel (%p1573) target = $region48
      $region47: #{tpu_custom_call.1} parent=5 // pred_region
        %s1576 = ssub.s32 %s15, 2
        // Predicated region
        $region49: #{tpu_custom_call.1} parent=47 // pred_check
          %p1577 = pneg %p154
        $region50: #{tpu_custom_call.1} parent=47 // pred_check_branch
          %1579 = sbr.rel (%p1577) target = $region52
        $region51: #{tpu_custom_call.1} parent=47 // pred_region
          %s1580 = sand.u32 %s139, 1
          %s1581 = scalar_lea.sflag [#allocation4], %s1580
          %s1582 = sand.u32 %s139, 1
          %s1583 = smul.addr %s1582, 8
          %s1584 = scalar_lea.vmem [#allocation3], %s1583
          %1585 = dma.done %s1581, 128
        $region52: #{tpu_custom_call.1} parent=47 // pred_fallthru
          _
      $region48: #{tpu_custom_call.1} parent=5 // pred_fallthru
        _
    $region6: #{tpu_custom_call.1} parent=1 // loop_footer
      %s19 = sadd.s32 1, %s15
    $region7: #{tpu_custom_call.1} parent=1 // loop_footer_branch
      %14 = sbr.rel target = $region3
    $region8: #{tpu_custom_call.1} parent=1 // loop_exit
      _
    %1586 = vsyncpa [#allocation4], 1
    %s1587 = scalar_lea.sflag [#allocation4], 1
    %1588 = vsyncpa %s1587, 1

</llo_original>
